<compile_context>
chip_gen: v7x
topology: tpu7x:2x2x1
jax: 0.10.0
libtpu: 0.0.40
codegen_flags: <defaults>
</compile_context>

<pallas_src>
import math

import jax
import jax.numpy as jnp
from jax import lax
from jax.experimental import pallas as pl
from jax.experimental.pallas import tpu as pltpu

# ---------------- config (small synthetic shapes) ----------------
BATCH = 2
SEQ = 16
HIDDEN = 32
NUM_HEADS = 4
HEAD_DIM = HIDDEN // NUM_HEADS
INTERMEDIATE = 64
LN_EPS = 1e-5  # torch.nn.LayerNorm default


def _layernorm(x, w, b):
    mu = jnp.mean(x, axis=-1, keepdims=True)
    var = jnp.mean(jnp.square(x - mu), axis=-1, keepdims=True)
    return (x - mu) * lax.rsqrt(var + LN_EPS) * w + b


def _gelu_exact(x):
    # nn.GELU() default == exact erf GELU
    return 0.5 * x * (1.0 + lax.erf(x * (1.0 / math.sqrt(2.0))))


def siglip_layer_kernel(
    x_ref,                 # (1, S, D) f32
    ln1_w, ln1_b,          # (1, D)    f32
    wqkv, bqkv,            # (D, 3D)   bf16, (1, 3D) f32
    wo, bo,                # (D, D)    bf16, (1, D)  f32
    ln2_w, ln2_b,          # (1, D)    f32
    w1, b1,                # (D, I)    bf16, (1, I)  f32
    w2, b2,                # (I, D)    bf16, (1, D)  f32
    o_ref,                 # (1, S, D) f32
    ctx_ref,               # (S, D)    bf16 VMEM scratch: per-head context lane slabs
):
    _, S, D = x_ref.shape
    H, Dh = NUM_HEADS, HEAD_DIM
    scale = 1.0 / math.sqrt(Dh)

    x = x_ref[0]  # (S, D) f32, one full sequence per grid step

    # ---- attention block (pre-norm) ----
    h1 = _layernorm(x, ln1_w[0], ln1_b[0])                       # f32
    # fused, lane-dense QKV projection: one (S, D) @ (D, 3D) MXU pass, f32 accumulate
    qkv = jnp.dot(h1.astype(jnp.bfloat16), wqkv[...],
                  preferred_element_type=jnp.float32) + bqkv[0]  # (S, 3D) f32

    for hd in range(H):  # static loop, H=4 at toy dims (fori_loop / grid axis at prod H)
        q = qkv[:, 0 * D + hd * Dh: 0 * D + (hd + 1) * Dh] * scale
        k = qkv[:, 1 * D + hd * Dh: 1 * D + (hd + 1) * Dh]
        v = qkv[:, 2 * D + hd * Dh: 2 * D + (hd + 1) * Dh]
        # q @ k^T without an explicit transpose: contract the last dims of both.
        scores = lax.dot_general(
            q.astype(jnp.bfloat16), k.astype(jnp.bfloat16),
            (((1,), (1,)), ((), ())),
            preferred_element_type=jnp.float32)                  # (S, S) f32
        m = jnp.max(scores, axis=-1, keepdims=True)
        e = jnp.exp(scores - m)                                  # f32 softmax numerator
        denom = jnp.sum(e, axis=-1, keepdims=True)               # f32
        ctx = jnp.dot(e.astype(jnp.bfloat16), v.astype(jnp.bfloat16),
                      preferred_element_type=jnp.float32)        # (S, Dh) f32
        ctx = ctx / denom                                        # exact norm, post p@v
        # heads side-by-side along lanes -> single full-depth out-projection below
        ctx_ref[:, hd * Dh:(hd + 1) * Dh] = ctx.astype(jnp.bfloat16)

    attn = jnp.dot(ctx_ref[...], wo[...],
                   preferred_element_type=jnp.float32) + bo[0]   # (S, D) f32
    x = x + attn                                                  # residual (f32)

    # ---- MLP block (pre-norm) ----
    h2 = _layernorm(x, ln2_w[0], ln2_b[0])
    m1 = jnp.dot(h2.astype(jnp.bfloat16), w1[...],
                 preferred_element_type=jnp.float32) + b1[0]     # (S, I) f32
    m1 = _gelu_exact(m1)                                         # exact erf (nn.GELU parity)
    m2 = jnp.dot(m1.astype(jnp.bfloat16), w2[...],
                 preferred_element_type=jnp.float32) + b2[0]     # (S, D) f32
    o_ref[0] = x + m2


def siglip_vision_layer(x, params):
    """x: (B, S, D) float32. params: dict of weights (see init_params)."""
    B, S, D = x.shape
    assert (S, D) == (SEQ, HIDDEN)
    H, Dh, I = NUM_HEADS, HEAD_DIM, INTERMEDIATE
    N = B * S

    bf = jnp.bfloat16
    # Trace-time weight prep (free): matmul weights in bf16 (halves VMEM/HBM bytes and
    # ~2-4x MXU throughput; mandatory at prod dims on v7x), biases / LN params in f32
    # (they are added/applied post f32 accumulation).
    weight_args = (
        params["ln1_w"], params["ln1_b"],
        params["wqkv"].astype(bf), params["bqkv"],
        params["wo"].astype(bf), params["bo"],
        params["ln2_w"], params["ln2_b"],
        params["w1"].astype(bf), params["b1"],
        params["w2"].astype(bf), params["b2"],
    )

    def wspec(a):
        # full-array block, constant index map -> fetched once, resident across steps
        return pl.BlockSpec(a.shape, lambda b, _nd=a.ndim: (0,) * _nd)

    in_specs = [pl.BlockSpec((1, S, D), lambda b: (b, 0, 0))] + [wspec(a) for a in weight_args]
    out_spec = pl.BlockSpec((1, S, D), lambda b: (b, 0, 0))

    # advisory cost estimate for the XLA scheduler (bf16 weight bytes, f32 activations)
    flops = int(
        2 * N * D * (3 * D)            # fused qkv projection
        + 2 * B * H * S * S * Dh * 2   # scores + p@v
        + 2 * N * D * D                # output projection
        + 2 * N * D * I * 2            # mlp fc1 + fc2
    )
    transcendentals = int(B * H * S * S + N * I + 2 * N)   # exp + erf + rsqrt
    bytes_accessed = int(
        4 * x.size + 4 * x.size
        + sum(a.size * a.dtype.itemsize for a in weight_args)
    )

    out = pl.pallas_call(
        siglip_layer_kernel,
        out_shape=jax.ShapeDtypeStruct((B, S, D), jnp.float32),
        grid_spec=pltpu.PrefetchScalarGridSpec(
            num_scalar_prefetch=0,
            grid=(B,),                       # one full sequence per step; batch-parallel
            in_specs=in_specs,
            out_specs=out_spec,
            scratch_shapes=[pltpu.VMEM((S, D), jnp.bfloat16)],  # head-context lane slabs
        ),
        compiler_params=pltpu.CompilerParams(
            dimension_semantics=("parallel",)),
        cost_estimate=pl.CostEstimate(
            flops=flops,
            transcendentals=transcendentals,
            bytes_accessed=bytes_accessed),
    )(x, *weight_args)

    return out


def init_params(key):
    """Deterministic synthetic parameters matching the module's __init__ shapes.

    Linear weights are stored pre-transposed as (in, out); biases as (1, out).
    """
    D, I3, I = HIDDEN, 3 * HIDDEN, INTERMEDIATE
    ks = jax.random.split(key, 8)
    s = 0.02
    params = {
        # attention_layernorm
        "ln1_w": jnp.ones((1, D), jnp.float32),
        "ln1_b": jnp.zeros((1, D), jnp.float32),
        # VisionAttention: qkv_proj (D -> 3D), out proj (D -> D)
        "wqkv": s * jax.random.normal(ks[0], (D, I3), jnp.float32),
        "bqkv": s * jax.random.normal(ks[1], (1, I3), jnp.float32),
        "wo": s * jax.random.normal(ks[2], (D, D), jnp.float32),
        "bo": s * jax.random.normal(ks[3], (1, D), jnp.float32),
        # mlp_layernorm
        "ln2_w": jnp.ones((1, D), jnp.float32),
        "ln2_b": jnp.zeros((1, D), jnp.float32),
        # mlp: ColumnParallelLinear (D -> I), RowParallelLinear (I -> D)
        "w1": s * jax.random.normal(ks[4], (D, I), jnp.float32),
        "b1": s * jax.random.normal(ks[5], (1, I), jnp.float32),
        "w2": s * jax.random.normal(ks[6], (I, D), jnp.float32),
        "b2": s * jax.random.normal(ks[7], (1, D), jnp.float32),
    }
    return params


def reference_layer(x, p):
    """Pure-JAX f32 reference of the module's forward pass (parity target)."""
    B, S, D = x.shape
    H, Dh = NUM_HEADS, HEAD_DIM
    res = x
    h = _layernorm(x, p["ln1_w"][0], p["ln1_b"][0])
    qkv = h @ p["wqkv"] + p["bqkv"][0]
    q, k, v = jnp.split(qkv, 3, axis=-1)
    q = q.reshape(B, S, H, Dh)
    k = k.reshape(B, S, H, Dh)
    v = v.reshape(B, S, H, Dh)
    scores = jnp.einsum("bqhd,bkhd->bhqk", q, k) / math.sqrt(Dh)
    probs = jax.nn.softmax(scores.astype(jnp.float32), axis=-1)
    ctx = jnp.einsum("bhqk,bkhd->bqhd", probs, v).reshape(B, S, D)
    attn = ctx @ p["wo"] + p["bo"][0]
    h = res + attn
    res = h
    m = _layernorm(h, p["ln2_w"][0], p["ln2_b"][0])
    m = _gelu_exact(m @ p["w1"] + p["b1"][0]) @ p["w2"] + p["b2"][0]
    return res + m


def reference_layer_bf16_matmuls(x, p):
    """Pure-JAX reference mirroring the kernel's bf16 matmul-operand casts
    (f32 accumulation, f32 LayerNorm/softmax/GELU/residuals).  Used for a tight
    structural-correctness check of the kernel."""
    bf = jnp.bfloat16
    B, S, D = x.shape
    H, Dh = NUM_HEADS, HEAD_DIM
    scale = 1.0 / math.sqrt(Dh)

    def dot32(a, b):
        return jnp.dot(a.astype(bf), b.astype(bf), preferred_element_type=jnp.float32)

    res = x
    h = _layernorm(x, p["ln1_w"][0], p["ln1_b"][0])
    qkv = dot32(h, p["wqkv"]) + p["bqkv"][0]                     # (B, S, 3D) f32
    qkv = qkv.reshape(B, S, 3, H, Dh)
    q, k, v = qkv[:, :, 0], qkv[:, :, 1], qkv[:, :, 2]
    scores = jnp.einsum("bqhd,bkhd->bhqk",
                        (q * scale).astype(bf), k.astype(bf),
                        preferred_element_type=jnp.float32)      # (B, H, S, S) f32
    m = jnp.max(scores, axis=-1, keepdims=True)
    e = jnp.exp(scores - m)
    denom = jnp.sum(e, axis=-1, keepdims=True)                   # (B, H, S, 1)
    ctx = jnp.einsum("bhqk,bkhd->bqhd", e.astype(bf), v.astype(bf),
                     preferred_element_type=jnp.float32)
    ctx = ctx / jnp.transpose(denom, (0, 2, 1, 3))               # normalize post p@v
    attn = dot32(ctx.reshape(B, S, D), p["wo"]) + p["bo"][0]
    h = res + attn
    res = h
    mm = _layernorm(h, p["ln2_w"][0], p["ln2_b"][0])
    mm = _gelu_exact(dot32(mm, p["w1"]) + p["b1"][0])
    mm = dot32(mm, p["w2"]) + p["b2"][0]
    return res + mm


if __name__ == "__main__":
    key = jax.random.PRNGKey(0)
    kx, kp = jax.random.split(key)
    x = jax.random.normal(kx, (BATCH, SEQ, HIDDEN), jnp.float32)
    params = init_params(kp)

    out = jax.block_until_ready(siglip_vision_layer(x, params))
    assert out.shape == (BATCH, SEQ, HIDDEN)
    assert out.dtype == jnp.float32

    # Tight structural check: reference mirrors the kernel's bf16 matmul-operand casts,
    # so only accumulation order / transcendental lowering differ.
    ref_bf = reference_layer_bf16_matmuls(x, params)
    err_bf = float(jnp.max(jnp.abs(out - ref_bf)))
    assert err_bf < 5e-4, f"kernel vs bf16-mirrored reference: max abs err {err_bf}"

    # Parity check vs the pure-f32 reference (the PyTorch module's numerics).
    # Tolerance covers bf16 rounding of matmul operands (review-recommended cast);
    # accumulation, LayerNorm, softmax, GELU and residuals remain f32.
    ref = reference_layer(x, params)
    err = float(jnp.max(jnp.abs(out - ref)))
    assert err < 1e-2, f"kernel vs f32 reference: max abs err {err}"

    print("KERNEL_OK")
</pallas_src>

<mosaic_0001>
module attributes {stable_mosaic.version = 11 : i64} {
  func.func @siglip_layer_kernel(%arg0: i32, %arg1: memref<1x16x32xf32, #tpu.memory_space<vmem>>, %arg2: memref<1x32xf32, #tpu.memory_space<vmem>>, %arg3: memref<1x32xf32, #tpu.memory_space<vmem>>, %arg4: memref<32x96xbf16, #tpu.memory_space<vmem>>, %arg5: memref<1x96xf32, #tpu.memory_space<vmem>>, %arg6: memref<32x32xbf16, #tpu.memory_space<vmem>>, %arg7: memref<1x32xf32, #tpu.memory_space<vmem>>, %arg8: memref<1x32xf32, #tpu.memory_space<vmem>>, %arg9: memref<1x32xf32, #tpu.memory_space<vmem>>, %arg10: memref<32x64xbf16, #tpu.memory_space<vmem>>, %arg11: memref<1x64xf32, #tpu.memory_space<vmem>>, %arg12: memref<64x32xbf16, #tpu.memory_space<vmem>>, %arg13: memref<1x32xf32, #tpu.memory_space<vmem>>, %arg14: memref<1x16x32xf32, #tpu.memory_space<vmem>>, %arg15: memref<16x32xbf16, #tpu.memory_space<vmem>>) attributes {dimension_semantics = [#tpu.dimension_semantics<parallel>], iteration_bounds = array<i64: 2>, scalar_prefetch = 0 : i64, scratch_operands = 1 : i64, tpu.core_type = #tpu.core_type<tc>, window_params = [{transform_indices = @transform_0, window_bounds = array<i64: 1, 16, 32>}, {pipeline_mode = #tpu.pipeline_mode<synchronous>, transform_indices = @transform_1, window_bounds = array<i64: 1, 32>}, {pipeline_mode = #tpu.pipeline_mode<synchronous>, transform_indices = @transform_2, window_bounds = array<i64: 1, 32>}, {pipeline_mode = #tpu.pipeline_mode<synchronous>, transform_indices = @transform_3, window_bounds = array<i64: 32, 96>}, {pipeline_mode = #tpu.pipeline_mode<synchronous>, transform_indices = @transform_4, window_bounds = array<i64: 1, 96>}, {pipeline_mode = #tpu.pipeline_mode<synchronous>, transform_indices = @transform_5, window_bounds = array<i64: 32, 32>}, {pipeline_mode = #tpu.pipeline_mode<synchronous>, transform_indices = @transform_6, window_bounds = array<i64: 1, 32>}, {pipeline_mode = #tpu.pipeline_mode<synchronous>, transform_indices = @transform_7, window_bounds = array<i64: 1, 32>}, {pipeline_mode = #tpu.pipeline_mode<synchronous>, transform_indices = @transform_8, window_bounds = array<i64: 1, 32>}, {pipeline_mode = #tpu.pipeline_mode<synchronous>, transform_indices = @transform_9, window_bounds = array<i64: 32, 64>}, {pipeline_mode = #tpu.pipeline_mode<synchronous>, transform_indices = @transform_10, window_bounds = array<i64: 1, 64>}, {pipeline_mode = #tpu.pipeline_mode<synchronous>, transform_indices = @transform_11, window_bounds = array<i64: 64, 32>}, {pipeline_mode = #tpu.pipeline_mode<synchronous>, transform_indices = @transform_12, window_bounds = array<i64: 1, 32>}, {transform_indices = @transform_13, window_bounds = array<i64: 1, 16, 32>}]} {
    %c0 = arith.constant 0 : index
    %c0_0 = arith.constant 0 : index
    %c0_1 = arith.constant 0 : index
    %0 = vector.load %arg1[%c0, %c0_0, %c0_1] : memref<1x16x32xf32, #tpu.memory_space<vmem>>, vector<1x16x32xf32>
    %1 = vector.shape_cast %0 : vector<1x16x32xf32> to vector<16x32xf32>
    %c0_2 = arith.constant 0 : index
    %c0_3 = arith.constant 0 : index
    %2 = vector.load %arg2[%c0_2, %c0_3] : memref<1x32xf32, #tpu.memory_space<vmem>>, vector<1x32xf32>
    %3 = vector.shape_cast %2 : vector<1x32xf32> to vector<32xf32>
    %c0_4 = arith.constant 0 : index
    %c0_5 = arith.constant 0 : index
    %4 = vector.load %arg3[%c0_4, %c0_5] : memref<1x32xf32, #tpu.memory_space<vmem>>, vector<1x32xf32>
    %5 = vector.shape_cast %4 : vector<1x32xf32> to vector<32xf32>
    %cst = arith.constant dense<0.000000e+00> : vector<16xf32>
    %6 = vector.multi_reduction <add>, %1, %cst [1] : vector<16x32xf32> to vector<16xf32>
    %7 = vector.shape_cast %6 : vector<16xf32> to vector<16x1xf32>
    %cst_6 = arith.constant 3.200000e+01 : f32
    %8 = vector.broadcast %cst_6 : f32 to vector<16x1xf32>
    %9 = arith.divf %7, %8 : vector<16x1xf32>
    %10 = vector.broadcast %9 : vector<16x1xf32> to vector<16x32xf32>
    %11 = arith.subf %1, %10 : vector<16x32xf32>
    %12 = arith.mulf %11, %11 : vector<16x32xf32>
    %cst_7 = arith.constant dense<0.000000e+00> : vector<16xf32>
    %13 = vector.multi_reduction <add>, %12, %cst_7 [1] : vector<16x32xf32> to vector<16xf32>
    %14 = vector.shape_cast %13 : vector<16xf32> to vector<16x1xf32>
    %cst_8 = arith.constant 3.200000e+01 : f32
    %15 = vector.broadcast %cst_8 : f32 to vector<16x1xf32>
    %16 = arith.divf %14, %15 : vector<16x1xf32>
    %17 = vector.broadcast %9 : vector<16x1xf32> to vector<16x32xf32>
    %18 = arith.subf %1, %17 : vector<16x32xf32>
    %cst_9 = arith.constant 9.99999974E-6 : f32
    %19 = vector.broadcast %cst_9 : f32 to vector<16x1xf32>
    %20 = arith.addf %16, %19 : vector<16x1xf32>
    %21 = math.rsqrt %20 : vector<16x1xf32>
    %22 = vector.broadcast %21 : vector<16x1xf32> to vector<16x32xf32>
    %23 = arith.mulf %18, %22 : vector<16x32xf32>
    %24 = vector.shape_cast %3 : vector<32xf32> to vector<1x32xf32>
    %25 = vector.broadcast %24 : vector<1x32xf32> to vector<16x32xf32>
    %26 = arith.mulf %23, %25 : vector<16x32xf32>
    %27 = vector.shape_cast %5 : vector<32xf32> to vector<1x32xf32>
    %28 = vector.broadcast %27 : vector<1x32xf32> to vector<16x32xf32>
    %29 = arith.addf %26, %28 : vector<16x32xf32>
    %30 = arith.truncf %29 : vector<16x32xf32> to vector<16x32xbf16>
    %c0_10 = arith.constant 0 : index
    %c0_11 = arith.constant 0 : index
    %31 = vector.load %arg4[%c0_10, %c0_11] : memref<32x96xbf16, #tpu.memory_space<vmem>>, vector<32x96xbf16>
    %cst_12 = arith.constant dense<0.000000e+00> : vector<16x96xf32>
    %32 = tpu.matmul %30, %31, %cst_12 {dimension_numbers = #tpu.dot_dimension_numbers<[1], [0], [0], [1], [0, 0, 1, 1], [], []>} : vector<16x32xbf16>, vector<32x96xbf16>, vector<16x96xf32> -> vector<16x96xf32>
    %c0_13 = arith.constant 0 : index
    %c0_14 = arith.constant 0 : index
    %33 = vector.load %arg5[%c0_13, %c0_14] : memref<1x96xf32, #tpu.memory_space<vmem>>, vector<1x96xf32>
    %34 = vector.shape_cast %33 : vector<1x96xf32> to vector<96xf32>
    %35 = vector.shape_cast %34 : vector<96xf32> to vector<1x96xf32>
    %36 = vector.broadcast %35 : vector<1x96xf32> to vector<16x96xf32>
    %37 = arith.addf %32, %36 : vector<16x96xf32>
    %38 = vector.extract_strided_slice %37 {offsets = [0, 0], sizes = [16, 8], strides = [1, 1]} : vector<16x96xf32> to vector<16x8xf32>
    %cst_15 = arith.constant 0.353553385 : f32
    %39 = vector.broadcast %cst_15 : f32 to vector<16x8xf32>
    %40 = arith.mulf %38, %39 : vector<16x8xf32>
    %41 = vector.extract_strided_slice %37 {offsets = [0, 32], sizes = [16, 8], strides = [1, 1]} : vector<16x96xf32> to vector<16x8xf32>
    %42 = vector.extract_strided_slice %37 {offsets = [0, 64], sizes = [16, 8], strides = [1, 1]} : vector<16x96xf32> to vector<16x8xf32>
    %43 = arith.truncf %40 : vector<16x8xf32> to vector<16x8xbf16>
    %44 = arith.truncf %41 : vector<16x8xf32> to vector<16x8xbf16>
    %cst_16 = arith.constant dense<0.000000e+00> : vector<16x16xf32>
    %45 = tpu.matmul %43, %44, %cst_16 {dimension_numbers = #tpu.dot_dimension_numbers<[1], [1], [0], [0], [0, 0, 1, 0], [], []>} : vector<16x8xbf16>, vector<16x8xbf16>, vector<16x16xf32> -> vector<16x16xf32>
    %cst_17 = arith.constant dense<0xFF800000> : vector<16xf32>
    %46 = vector.multi_reduction <maximumf>, %45, %cst_17 [1] : vector<16x16xf32> to vector<16xf32>
    %47 = vector.shape_cast %46 : vector<16xf32> to vector<16x1xf32>
    %48 = vector.broadcast %47 : vector<16x1xf32> to vector<16x16xf32>
    %49 = arith.subf %45, %48 : vector<16x16xf32>
    %50 = math.exp %49 : vector<16x16xf32>
    %cst_18 = arith.constant dense<0.000000e+00> : vector<16xf32>
    %51 = vector.multi_reduction <add>, %50, %cst_18 [1] : vector<16x16xf32> to vector<16xf32>
    %52 = vector.shape_cast %51 : vector<16xf32> to vector<16x1xf32>
    %53 = arith.truncf %50 : vector<16x16xf32> to vector<16x16xbf16>
    %54 = arith.truncf %42 : vector<16x8xf32> to vector<16x8xbf16>
    %cst_19 = arith.constant dense<0.000000e+00> : vector<16x8xf32>
    %55 = tpu.matmul %53, %54, %cst_19 {dimension_numbers = #tpu.dot_dimension_numbers<[1], [0], [0], [1], [0, 0, 1, 1], [], []>} : vector<16x16xbf16>, vector<16x8xbf16>, vector<16x8xf32> -> vector<16x8xf32>
    %56 = vector.broadcast %52 : vector<16x1xf32> to vector<16x8xf32>
    %57 = arith.divf %55, %56 : vector<16x8xf32>
    %58 = arith.truncf %57 : vector<16x8xf32> to vector<16x8xbf16>
    %c0_20 = arith.constant 0 : index
    %c0_21 = arith.constant 0 : index
    %59 = vector.load %arg15[%c0_20, %c0_21] : memref<16x32xbf16, #tpu.memory_space<vmem>>, vector<16x8xbf16>
    tpu.vector_store %arg15[%c0_20, %c0_21], %58 {strides = array<i32>} : memref<16x32xbf16, #tpu.memory_space<vmem>>, vector<16x8xbf16>,
    %60 = vector.extract_strided_slice %37 {offsets = [0, 8], sizes = [16, 8], strides = [1, 1]} : vector<16x96xf32> to vector<16x8xf32>
    %cst_22 = arith.constant 0.353553385 : f32
    %61 = vector.broadcast %cst_22 : f32 to vector<16x8xf32>
    %62 = arith.mulf %60, %61 : vector<16x8xf32>
    %63 = vector.extract_strided_slice %37 {offsets = [0, 40], sizes = [16, 8], strides = [1, 1]} : vector<16x96xf32> to vector<16x8xf32>
    %64 = vector.extract_strided_slice %37 {offsets = [0, 72], sizes = [16, 8], strides = [1, 1]} : vector<16x96xf32> to vector<16x8xf32>
    %65 = arith.truncf %62 : vector<16x8xf32> to vector<16x8xbf16>
    %66 = arith.truncf %63 : vector<16x8xf32> to vector<16x8xbf16>
    %cst_23 = arith.constant dense<0.000000e+00> : vector<16x16xf32>
    %67 = tpu.matmul %65, %66, %cst_23 {dimension_numbers = #tpu.dot_dimension_numbers<[1], [1], [0], [0], [0, 0, 1, 0], [], []>} : vector<16x8xbf16>, vector<16x8xbf16>, vector<16x16xf32> -> vector<16x16xf32>
    %cst_24 = arith.constant dense<0xFF800000> : vector<16xf32>
    %68 = vector.multi_reduction <maximumf>, %67, %cst_24 [1] : vector<16x16xf32> to vector<16xf32>
    %69 = vector.shape_cast %68 : vector<16xf32> to vector<16x1xf32>
    %70 = vector.broadcast %69 : vector<16x1xf32> to vector<16x16xf32>
    %71 = arith.subf %67, %70 : vector<16x16xf32>
    %72 = math.exp %71 : vector<16x16xf32>
    %cst_25 = arith.constant dense<0.000000e+00> : vector<16xf32>
    %73 = vector.multi_reduction <add>, %72, %cst_25 [1] : vector<16x16xf32> to vector<16xf32>
    %74 = vector.shape_cast %73 : vector<16xf32> to vector<16x1xf32>
    %75 = arith.truncf %72 : vector<16x16xf32> to vector<16x16xbf16>
    %76 = arith.truncf %64 : vector<16x8xf32> to vector<16x8xbf16>
    %cst_26 = arith.constant dense<0.000000e+00> : vector<16x8xf32>
    %77 = tpu.matmul %75, %76, %cst_26 {dimension_numbers = #tpu.dot_dimension_numbers<[1], [0], [0], [1], [0, 0, 1, 1], [], []>} : vector<16x16xbf16>, vector<16x8xbf16>, vector<16x8xf32> -> vector<16x8xf32>
    %78 = vector.broadcast %74 : vector<16x1xf32> to vector<16x8xf32>
    %79 = arith.divf %77, %78 : vector<16x8xf32>
    %80 = arith.truncf %79 : vector<16x8xf32> to vector<16x8xbf16>
    %c0_27 = arith.constant 0 : index
    %c8 = arith.constant 8 : index
    %81 = vector.load %arg15[%c0_27, %c8] : memref<16x32xbf16, #tpu.memory_space<vmem>>, vector<16x8xbf16>
    tpu.vector_store %arg15[%c0_27, %c8], %80 {strides = array<i32>} : memref<16x32xbf16, #tpu.memory_space<vmem>>, vector<16x8xbf16>,
    %82 = vector.extract_strided_slice %37 {offsets = [0, 16], sizes = [16, 8], strides = [1, 1]} : vector<16x96xf32> to vector<16x8xf32>
    %cst_28 = arith.constant 0.353553385 : f32
    %83 = vector.broadcast %cst_28 : f32 to vector<16x8xf32>
    %84 = arith.mulf %82, %83 : vector<16x8xf32>
    %85 = vector.extract_strided_slice %37 {offsets = [0, 48], sizes = [16, 8], strides = [1, 1]} : vector<16x96xf32> to vector<16x8xf32>
    %86 = vector.extract_strided_slice %37 {offsets = [0, 80], sizes = [16, 8], strides = [1, 1]} : vector<16x96xf32> to vector<16x8xf32>
    %87 = arith.truncf %84 : vector<16x8xf32> to vector<16x8xbf16>
    %88 = arith.truncf %85 : vector<16x8xf32> to vector<16x8xbf16>
    %cst_29 = arith.constant dense<0.000000e+00> : vector<16x16xf32>
    %89 = tpu.matmul %87, %88, %cst_29 {dimension_numbers = #tpu.dot_dimension_numbers<[1], [1], [0], [0], [0, 0, 1, 0], [], []>} : vector<16x8xbf16>, vector<16x8xbf16>, vector<16x16xf32> -> vector<16x16xf32>
    %cst_30 = arith.constant dense<0xFF800000> : vector<16xf32>
    %90 = vector.multi_reduction <maximumf>, %89, %cst_30 [1] : vector<16x16xf32> to vector<16xf32>
    %91 = vector.shape_cast %90 : vector<16xf32> to vector<16x1xf32>
    %92 = vector.broadcast %91 : vector<16x1xf32> to vector<16x16xf32>
    %93 = arith.subf %89, %92 : vector<16x16xf32>
    %94 = math.exp %93 : vector<16x16xf32>
    %cst_31 = arith.constant dense<0.000000e+00> : vector<16xf32>
    %95 = vector.multi_reduction <add>, %94, %cst_31 [1] : vector<16x16xf32> to vector<16xf32>
    %96 = vector.shape_cast %95 : vector<16xf32> to vector<16x1xf32>
    %97 = arith.truncf %94 : vector<16x16xf32> to vector<16x16xbf16>
    %98 = arith.truncf %86 : vector<16x8xf32> to vector<16x8xbf16>
    %cst_32 = arith.constant dense<0.000000e+00> : vector<16x8xf32>
    %99 = tpu.matmul %97, %98, %cst_32 {dimension_numbers = #tpu.dot_dimension_numbers<[1], [0], [0], [1], [0, 0, 1, 1], [], []>} : vector<16x16xbf16>, vector<16x8xbf16>, vector<16x8xf32> -> vector<16x8xf32>
    %100 = vector.broadcast %96 : vector<16x1xf32> to vector<16x8xf32>
    %101 = arith.divf %99, %100 : vector<16x8xf32>
    %102 = arith.truncf %101 : vector<16x8xf32> to vector<16x8xbf16>
    %c0_33 = arith.constant 0 : index
    %c16 = arith.constant 16 : index
    %103 = vector.load %arg15[%c0_33, %c16] : memref<16x32xbf16, #tpu.memory_space<vmem>>, vector<16x8xbf16>
    tpu.vector_store %arg15[%c0_33, %c16], %102 {strides = array<i32>} : memref<16x32xbf16, #tpu.memory_space<vmem>>, vector<16x8xbf16>,
    %104 = vector.extract_strided_slice %37 {offsets = [0, 24], sizes = [16, 8], strides = [1, 1]} : vector<16x96xf32> to vector<16x8xf32>
    %cst_34 = arith.constant 0.353553385 : f32
    %105 = vector.broadcast %cst_34 : f32 to vector<16x8xf32>
    %106 = arith.mulf %104, %105 : vector<16x8xf32>
    %107 = vector.extract_strided_slice %37 {offsets = [0, 56], sizes = [16, 8], strides = [1, 1]} : vector<16x96xf32> to vector<16x8xf32>
    %108 = vector.extract_strided_slice %37 {offsets = [0, 88], sizes = [16, 8], strides = [1, 1]} : vector<16x96xf32> to vector<16x8xf32>
    %109 = arith.truncf %106 : vector<16x8xf32> to vector<16x8xbf16>
    %110 = arith.truncf %107 : vector<16x8xf32> to vector<16x8xbf16>
    %cst_35 = arith.constant dense<0.000000e+00> : vector<16x16xf32>
    %111 = tpu.matmul %109, %110, %cst_35 {dimension_numbers = #tpu.dot_dimension_numbers<[1], [1], [0], [0], [0, 0, 1, 0], [], []>} : vector<16x8xbf16>, vector<16x8xbf16>, vector<16x16xf32> -> vector<16x16xf32>
    %cst_36 = arith.constant dense<0xFF800000> : vector<16xf32>
    %112 = vector.multi_reduction <maximumf>, %111, %cst_36 [1] : vector<16x16xf32> to vector<16xf32>
    %113 = vector.shape_cast %112 : vector<16xf32> to vector<16x1xf32>
    %114 = vector.broadcast %113 : vector<16x1xf32> to vector<16x16xf32>
    %115 = arith.subf %111, %114 : vector<16x16xf32>
    %116 = math.exp %115 : vector<16x16xf32>
    %cst_37 = arith.constant dense<0.000000e+00> : vector<16xf32>
    %117 = vector.multi_reduction <add>, %116, %cst_37 [1] : vector<16x16xf32> to vector<16xf32>
    %118 = vector.shape_cast %117 : vector<16xf32> to vector<16x1xf32>
    %119 = arith.truncf %116 : vector<16x16xf32> to vector<16x16xbf16>
    %120 = arith.truncf %108 : vector<16x8xf32> to vector<16x8xbf16>
    %cst_38 = arith.constant dense<0.000000e+00> : vector<16x8xf32>
    %121 = tpu.matmul %119, %120, %cst_38 {dimension_numbers = #tpu.dot_dimension_numbers<[1], [0], [0], [1], [0, 0, 1, 1], [], []>} : vector<16x16xbf16>, vector<16x8xbf16>, vector<16x8xf32> -> vector<16x8xf32>
    %122 = vector.broadcast %118 : vector<16x1xf32> to vector<16x8xf32>
    %123 = arith.divf %121, %122 : vector<16x8xf32>
    %124 = arith.truncf %123 : vector<16x8xf32> to vector<16x8xbf16>
    %c0_39 = arith.constant 0 : index
    %c24 = arith.constant 24 : index
    %125 = vector.load %arg15[%c0_39, %c24] : memref<16x32xbf16, #tpu.memory_space<vmem>>, vector<16x8xbf16>
    tpu.vector_store %arg15[%c0_39, %c24], %124 {strides = array<i32>} : memref<16x32xbf16, #tpu.memory_space<vmem>>, vector<16x8xbf16>,
    %c0_40 = arith.constant 0 : index
    %c0_41 = arith.constant 0 : index
    %126 = vector.load %arg15[%c0_40, %c0_41] : memref<16x32xbf16, #tpu.memory_space<vmem>>, vector<16x32xbf16>
    %c0_42 = arith.constant 0 : index
    %c0_43 = arith.constant 0 : index
    %127 = vector.load %arg6[%c0_42, %c0_43] : memref<32x32xbf16, #tpu.memory_space<vmem>>, vector<32x32xbf16>
    %cst_44 = arith.constant dense<0.000000e+00> : vector<16x32xf32>
    %128 = tpu.matmul %126, %127, %cst_44 {dimension_numbers = #tpu.dot_dimension_numbers<[1], [0], [0], [1], [0, 0, 1, 1], [], []>} : vector<16x32xbf16>, vector<32x32xbf16>, vector<16x32xf32> -> vector<16x32xf32>
    %c0_45 = arith.constant 0 : index
    %c0_46 = arith.constant 0 : index
    %129 = vector.load %arg7[%c0_45, %c0_46] : memref<1x32xf32, #tpu.memory_space<vmem>>, vector<1x32xf32>
    %130 = vector.shape_cast %129 : vector<1x32xf32> to vector<32xf32>
    %131 = vector.shape_cast %130 : vector<32xf32> to vector<1x32xf32>
    %132 = vector.broadcast %131 : vector<1x32xf32> to vector<16x32xf32>
    %133 = arith.addf %128, %132 : vector<16x32xf32>
    %134 = arith.addf %1, %133 : vector<16x32xf32>
    %c0_47 = arith.constant 0 : index
    %c0_48 = arith.constant 0 : index
    %135 = vector.load %arg8[%c0_47, %c0_48] : memref<1x32xf32, #tpu.memory_space<vmem>>, vector<1x32xf32>
    %136 = vector.shape_cast %135 : vector<1x32xf32> to vector<32xf32>
    %c0_49 = arith.constant 0 : index
    %c0_50 = arith.constant 0 : index
    %137 = vector.load %arg9[%c0_49, %c0_50] : memref<1x32xf32, #tpu.memory_space<vmem>>, vector<1x32xf32>
    %138 = vector.shape_cast %137 : vector<1x32xf32> to vector<32xf32>
    %cst_51 = arith.constant dense<0.000000e+00> : vector<16xf32>
    %139 = vector.multi_reduction <add>, %134, %cst_51 [1] : vector<16x32xf32> to vector<16xf32>
    %140 = vector.shape_cast %139 : vector<16xf32> to vector<16x1xf32>
    %cst_52 = arith.constant 3.200000e+01 : f32
    %141 = vector.broadcast %cst_52 : f32 to vector<16x1xf32>
    %142 = arith.divf %140, %141 : vector<16x1xf32>
    %143 = vector.broadcast %142 : vector<16x1xf32> to vector<16x32xf32>
    %144 = arith.subf %134, %143 : vector<16x32xf32>
    %145 = arith.mulf %144, %144 : vector<16x32xf32>
    %cst_53 = arith.constant dense<0.000000e+00> : vector<16xf32>
    %146 = vector.multi_reduction <add>, %145, %cst_53 [1] : vector<16x32xf32> to vector<16xf32>
    %147 = vector.shape_cast %146 : vector<16xf32> to vector<16x1xf32>
    %cst_54 = arith.constant 3.200000e+01 : f32
    %148 = vector.broadcast %cst_54 : f32 to vector<16x1xf32>
    %149 = arith.divf %147, %148 : vector<16x1xf32>
    %150 = vector.broadcast %142 : vector<16x1xf32> to vector<16x32xf32>
    %151 = arith.subf %134, %150 : vector<16x32xf32>
    %cst_55 = arith.constant 9.99999974E-6 : f32
    %152 = vector.broadcast %cst_55 : f32 to vector<16x1xf32>
    %153 = arith.addf %149, %152 : vector<16x1xf32>
    %154 = math.rsqrt %153 : vector<16x1xf32>
    %155 = vector.broadcast %154 : vector<16x1xf32> to vector<16x32xf32>
    %156 = arith.mulf %151, %155 : vector<16x32xf32>
    %157 = vector.shape_cast %136 : vector<32xf32> to vector<1x32xf32>
    %158 = vector.broadcast %157 : vector<1x32xf32> to vector<16x32xf32>
    %159 = arith.mulf %156, %158 : vector<16x32xf32>
    %160 = vector.shape_cast %138 : vector<32xf32> to vector<1x32xf32>
    %161 = vector.broadcast %160 : vector<1x32xf32> to vector<16x32xf32>
    %162 = arith.addf %159, %161 : vector<16x32xf32>
    %163 = arith.truncf %162 : vector<16x32xf32> to vector<16x32xbf16>
    %c0_56 = arith.constant 0 : index
    %c0_57 = arith.constant 0 : index
    %164 = vector.load %arg10[%c0_56, %c0_57] : memref<32x64xbf16, #tpu.memory_space<vmem>>, vector<32x64xbf16>
    %cst_58 = arith.constant dense<0.000000e+00> : vector<16x64xf32>
    %165 = tpu.matmul %163, %164, %cst_58 {dimension_numbers = #tpu.dot_dimension_numbers<[1], [0], [0], [1], [0, 0, 1, 1], [], []>} : vector<16x32xbf16>, vector<32x64xbf16>, vector<16x64xf32> -> vector<16x64xf32>
    %c0_59 = arith.constant 0 : index
    %c0_60 = arith.constant 0 : index
    %166 = vector.load %arg11[%c0_59, %c0_60] : memref<1x64xf32, #tpu.memory_space<vmem>>, vector<1x64xf32>
    %167 = vector.shape_cast %166 : vector<1x64xf32> to vector<64xf32>
    %168 = vector.shape_cast %167 : vector<64xf32> to vector<1x64xf32>
    %169 = vector.broadcast %168 : vector<1x64xf32> to vector<16x64xf32>
    %170 = arith.addf %165, %169 : vector<16x64xf32>
    %cst_61 = arith.constant 5.000000e-01 : f32
    %171 = vector.broadcast %cst_61 : f32 to vector<16x64xf32>
    %172 = arith.mulf %171, %170 : vector<16x64xf32>
    %cst_62 = arith.constant 0.707106769 : f32
    %173 = vector.broadcast %cst_62 : f32 to vector<16x64xf32>
    %174 = arith.mulf %170, %173 : vector<16x64xf32>
    %175 = math.erf %174 : vector<16x64xf32>
    %cst_63 = arith.constant 1.000000e+00 : f32
    %176 = vector.broadcast %cst_63 : f32 to vector<16x64xf32>
    %177 = arith.addf %176, %175 : vector<16x64xf32>
    %178 = arith.mulf %172, %177 : vector<16x64xf32>
    %179 = arith.truncf %178 : vector<16x64xf32> to vector<16x64xbf16>
    %c0_64 = arith.constant 0 : index
    %c0_65 = arith.constant 0 : index
    %180 = vector.load %arg12[%c0_64, %c0_65] : memref<64x32xbf16, #tpu.memory_space<vmem>>, vector<64x32xbf16>
    %cst_66 = arith.constant dense<0.000000e+00> : vector<16x32xf32>
    %181 = tpu.matmul %179, %180, %cst_66 {dimension_numbers = #tpu.dot_dimension_numbers<[1], [0], [0], [1], [0, 0, 1, 1], [], []>} : vector<16x64xbf16>, vector<64x32xbf16>, vector<16x32xf32> -> vector<16x32xf32>
    %c0_67 = arith.constant 0 : index
    %c0_68 = arith.constant 0 : index
    %182 = vector.load %arg13[%c0_67, %c0_68] : memref<1x32xf32, #tpu.memory_space<vmem>>, vector<1x32xf32>
    %183 = vector.shape_cast %182 : vector<1x32xf32> to vector<32xf32>
    %184 = vector.shape_cast %183 : vector<32xf32> to vector<1x32xf32>
    %185 = vector.broadcast %184 : vector<1x32xf32> to vector<16x32xf32>
    %186 = arith.addf %181, %185 : vector<16x32xf32>
    %187 = arith.addf %134, %186 : vector<16x32xf32>
    %c0_69 = arith.constant 0 : index
    %c0_70 = arith.constant 0 : index
    %c0_71 = arith.constant 0 : index
    %188 = vector.load %arg14[%c0_69, %c0_70, %c0_71] : memref<1x16x32xf32, #tpu.memory_space<vmem>>, vector<1x16x32xf32>
    %189 = vector.shape_cast %188 : vector<1x16x32xf32> to vector<16x32xf32>
    %190 = vector.shape_cast %187 : vector<16x32xf32> to vector<1x16x32xf32>
    tpu.vector_store %arg14[%c0_69, %c0_70, %c0_71], %190 {strides = array<i32>} : memref<1x16x32xf32, #tpu.memory_space<vmem>>, vector<1x16x32xf32>,
    return
  }
  func.func @transform_0(%arg0: i32) -> (i32, i32, i32) {
    %c0_i32 = arith.constant 0 : i32
    %c0_i32_0 = arith.constant 0 : i32
    %c0_i32_1 = arith.constant 0 : i32
    return %arg0, %c0_i32, %c0_i32_0 : i32, i32, i32
  }
  func.func @transform_1(%arg0: i32) -> (i32, i32) {
    %c0_i32 = arith.constant 0 : i32
    %c0_i32_0 = arith.constant 0 : i32
    %c0_i32_1 = arith.constant 0 : i32
    return %c0_i32, %c0_i32_0 : i32, i32
  }
  func.func @transform_2(%arg0: i32) -> (i32, i32) {
    %c0_i32 = arith.constant 0 : i32
    %c0_i32_0 = arith.constant 0 : i32
    %c0_i32_1 = arith.constant 0 : i32
    return %c0_i32, %c0_i32_0 : i32, i32
  }
  func.func @transform_3(%arg0: i32) -> (i32, i32) {
    %c0_i32 = arith.constant 0 : i32
    %c0_i32_0 = arith.constant 0 : i32
    %c0_i32_1 = arith.constant 0 : i32
    return %c0_i32, %c0_i32_0 : i32, i32
  }
  func.func @transform_4(%arg0: i32) -> (i32, i32) {
    %c0_i32 = arith.constant 0 : i32
    %c0_i32_0 = arith.constant 0 : i32
    %c0_i32_1 = arith.constant 0 : i32
    return %c0_i32, %c0_i32_0 : i32, i32
  }
  func.func @transform_5(%arg0: i32) -> (i32, i32) {
    %c0_i32 = arith.constant 0 : i32
    %c0_i32_0 = arith.constant 0 : i32
    %c0_i32_1 = arith.constant 0 : i32
    return %c0_i32, %c0_i32_0 : i32, i32
  }
  func.func @transform_6(%arg0: i32) -> (i32, i32) {
    %c0_i32 = arith.constant 0 : i32
    %c0_i32_0 = arith.constant 0 : i32
    %c0_i32_1 = arith.constant 0 : i32
    return %c0_i32, %c0_i32_0 : i32, i32
  }
  func.func @transform_7(%arg0: i32) -> (i32, i32) {
    %c0_i32 = arith.constant 0 : i32
    %c0_i32_0 = arith.constant 0 : i32
    %c0_i32_1 = arith.constant 0 : i32
    return %c0_i32, %c0_i32_0 : i32, i32
  }
  func.func @transform_8(%arg0: i32) -> (i32, i32) {
    %c0_i32 = arith.constant 0 : i32
    %c0_i32_0 = arith.constant 0 : i32
    %c0_i32_1 = arith.constant 0 : i32
    return %c0_i32, %c0_i32_0 : i32, i32
  }
  func.func @transform_9(%arg0: i32) -> (i32, i32) {
    %c0_i32 = arith.constant 0 : i32
    %c0_i32_0 = arith.constant 0 : i32
    %c0_i32_1 = arith.constant 0 : i32
    return %c0_i32, %c0_i32_0 : i32, i32
  }
  func.func @transform_10(%arg0: i32) -> (i32, i32) {
    %c0_i32 = arith.constant 0 : i32
    %c0_i32_0 = arith.constant 0 : i32
    %c0_i32_1 = arith.constant 0 : i32
    return %c0_i32, %c0_i32_0 : i32, i32
  }
  func.func @transform_11(%arg0: i32) -> (i32, i32) {
    %c0_i32 = arith.constant 0 : i32
    %c0_i32_0 = arith.constant 0 : i32
    %c0_i32_1 = arith.constant 0 : i32
    return %c0_i32, %c0_i32_0 : i32, i32
  }
  func.func @transform_12(%arg0: i32) -> (i32, i32) {
    %c0_i32 = arith.constant 0 : i32
    %c0_i32_0 = arith.constant 0 : i32
    %c0_i32_1 = arith.constant 0 : i32
    return %c0_i32, %c0_i32_0 : i32, i32
  }
  func.func @transform_13(%arg0: i32) -> (i32, i32, i32) {
    %c0_i32 = arith.constant 0 : i32
    %c0_i32_0 = arith.constant 0 : i32
    %c0_i32_1 = arith.constant 0 : i32
    return %arg0, %c0_i32, %c0_i32_0 : i32, i32, i32
  }
}

</mosaic_0001>

<llo_original>
// kernel: tpu_custom_call.1
$region0: #{tpu_custom_call.1}
  #allocation0 [shape = 'u32[]', space=smem, size = 0x4, offset = 0x4, fixed_abs, tag = 'smem constant byte address 0x4 - core index']
  #allocation1 [shape = 'u32[144,128]{1,0:T(1,128)}', space=vmem, size = 0x12000, scoped, tag = 'internal scratch']
  #allocation2 [shape = 'bf16[16,32]{1,0:T(16,128)(2,1)}', space=vmem, size = 0x1000, scoped, tag = 'scratch operand']
  %s0 = inlined_call_operand.vmem [shape: f32[2,16,32], index: 0, kind: input, shape index: {}]
  %s1 = inlined_call_operand.vmem [shape: f32[1,32], index: 1, kind: input, shape index: {}]
  %s2 = inlined_call_operand.vmem [shape: f32[1,32], index: 2, kind: input, shape index: {}]
  %s3 = inlined_call_operand.vmem [shape: bf16[32,96], index: 3, kind: input, shape index: {}]
  %s4 = inlined_call_operand.hbm [shape: f32[1,96], index: 4, kind: input, shape index: {}]
  %s5 = inlined_call_operand.hbm [shape: bf16[32,32], index: 5, kind: input, shape index: {}]
  %s6 = inlined_call_operand.hbm [shape: f32[1,32], index: 6, kind: input, shape index: {}]
  %s7 = inlined_call_operand.hbm [shape: f32[1,32], index: 7, kind: input, shape index: {}]
  %s8 = inlined_call_operand.hbm [shape: f32[1,32], index: 8, kind: input, shape index: {}]
  %s9 = inlined_call_operand.vmem [shape: bf16[32,64], index: 9, kind: input, shape index: {}]
  %s10 = inlined_call_operand.vmem [shape: f32[1,64], index: 10, kind: input, shape index: {}]
  %s11 = inlined_call_operand.vmem [shape: bf16[64,32], index: 11, kind: input, shape index: {}]
  %s12 = inlined_call_operand.vmem [shape: f32[1,32], index: 12, kind: input, shape index: {}]
  %s13 = inlined_call_operand.hbm [shape: f32[2,16,32], index: 13, kind: output, shape index: {}]
  %s14 = sld [smem:[#allocation0]]
  $region105: #{tpu_custom_call.1} parent=0
    _
  %s16 = ssub.s32 1, %s14
  %s17 = scalar_select 0, %s16, %s14
  $region1: #{tpu_custom_call.1} parent=0
    #allocation3 [shape = 'u8[512]{0}', space=vmem, size = 0x400, scoped, tag = 'input window, operand 4, single buffered']
    #allocation4 [shape = 's32[2]{0}', space=sflag, size = 0x8, scoped, tag = 'scoped memory for tpu_custom_call.1']
    #allocation5 [shape = 's32[2]{0}', space=sflag, size = 0x8, scoped, tag = 'scoped memory for tpu_custom_call.1']
    #allocation6 [shape = 'u8[8192]{0}', space=vmem, size = 0x2000, scoped, tag = 'input window, operand 5, single buffered']
    #allocation7 [shape = 's32[1]{0}', space=sflag, size = 0x4, scoped, tag = 'scoped memory for tpu_custom_call.1']
    #allocation8 [shape = 'u8[512]{0}', space=vmem, size = 0x400, scoped, tag = 'input window, operand 6, single buffered']
    #allocation9 [shape = 'u8[512]{0}', space=vmem, size = 0x400, scoped, tag = 'input window, operand 7, single buffered']
    #allocation10 [shape = 's32[1]{0}', space=sflag, size = 0x4, scoped, tag = 'scoped memory for tpu_custom_call.1']
    #allocation11 [shape = 'u8[512]{0}', space=vmem, size = 0x400, scoped, tag = 'input window, operand 8, single buffered']
    #allocation12 [shape = 'u8[16384]{0}', space=vmem, size = 0x4000, scoped, tag = 'output window, operand 0']
    %18 = vsyncpa [#allocation4], 0
    %19 = vsyncpa [#allocation7], 0
    %20 = vsyncpa [#allocation10], 0
    %21 = vsyncpa [#allocation5], 0
    %s22 = scalar_lea.sflag [#allocation5], 1
    %23 = vsyncpa %s22, 0
    loop: start=0, step=1, limit=4
    $region2: #{tpu_custom_call.1} parent=1 // loop_pre_header
      _
    $region3: #{tpu_custom_call.1} parent=1 // loop_header
      %s25 = sphi 0, %s29
      %p26 = scmp.ge.s32.totalorder %s25, 4
      %s35 = sphi 0, %s37
      %s38 = sphi 0, %s35
      %s39 = sphi 0, %s38
      %s55 = sphi 0, %s39
      %s59 = sphi 0, %s59
      %s61 = sphi 0, %s59
      %s62 = sphi 0, %s61
      %s76 = sphi 0, %s62
      %s80 = sphi 0, %s80
      %s82 = sphi 0, %s80
      %s83 = sphi 0, %s82
      %s97 = sphi 0, %s83
      %s101 = sphi 0, %s101
      %s103 = sphi 0, %s101
      %s104 = sphi 0, %s103
      %s118 = sphi 0, %s104
      %s122 = sphi 0, %s122
      %s124 = sphi 0, %s122
      %s125 = sphi 0, %s124
      %s139 = sphi 0, %s125
      %s143 = sphi 0, %s143
      %s145 = sphi 0, %s143
      %s146 = sphi 0, %s145
      %s160 = sphi 0, %s146
      %s164 = sphi 0, %s164
      %s166 = sphi 0, %s164
      %s167 = sphi 0, %s166
      %s181 = sphi 0, %s167
      %s185 = sphi 0, %s185
      %s187 = sphi 0, %s185
      %s188 = sphi 0, %s187
      %s202 = sphi 0, %s188
      %s206 = sphi 0, %s206
      %s208 = sphi 0, %s206
      %s209 = sphi 0, %s208
      %s223 = sphi 0, %s209
      %s227 = sphi 0, %s227
      %s229 = sphi 0, %s227
      %s230 = sphi 0, %s229
      %s244 = sphi 0, %s230
      %s248 = sphi 0, %s248
      %s250 = sphi 0, %s248
      %s251 = sphi 0, %s250
      %s265 = sphi 0, %s251
      %s269 = sphi 0, %s269
      %s271 = sphi 0, %s269
      %s272 = sphi 0, %s271
      %s286 = sphi 0, %s272
      %s290 = sphi 0, %s290
      %s292 = sphi 0, %s290
      %s293 = sphi 0, %s292
      %s307 = sphi 0, %s293
      %s313 = sphi 0, %s315
      %s316 = sphi 0, %s313
      %s317 = sphi 0, %s316
      %s333 = sphi 0, %s317
    $region4: #{tpu_custom_call.1} parent=1 // loop_header_branch
      %28 = sbr.rel (%p26) target = $region8
    $region5: #{tpu_custom_call.1} parent=1 // loop_body
      %s30 = ssub.s32 %s25, 1
      %s31 = ssub.s32 %s25, 2
      %s32 = sadd.s32 %s25, 1
      %s33 = ssub.s32 %s25, %s32
      %p34 = scmp.eq.s32.totalorder %s33, 0
      %s36 = sadd.s32 %s35, 1
      %s37 = scalar_select %p34, %s35, %s36
      %p40 = pneg %p34
      %p41 = scmp.eq.s32.totalorder %s25, 1
      %p42 = por %p40, %p41
      %p43 = scmp.ne.s32.totalorder %s35, %s38
      %p44 = scmp.eq.s32.totalorder %s25, 0
      %p45 = por %p43, %p44
      %p46 = scmp.ne.s32.totalorder %s35, %s38
      %p47 = scmp.eq.s32.totalorder %s30, 1
      %p48 = por %p46, %p47
      %p49 = scmp.ne.s32.totalorder %s38, %s39
      %p50 = scmp.eq.s32.totalorder %s30, 0
      %p51 = por %p49, %p50
      %p52 = scmp.ne.s32.totalorder %s38, %s39
      %p53 = scmp.eq.s32.totalorder %s31, 1
      %p54 = por %p52, %p53
      %p56 = scmp.ne.s32.totalorder %s39, %s55
      %p57 = scmp.eq.s32.totalorder %s31, 0
      %p58 = por %p56, %p57
      %s60 = sadd.s32 %s59, 1
      %p63 = scmp.eq.s32.totalorder %s25, 1
      %p64 = scmp.ne.s32.totalorder %s59, %s61
      %p65 = scmp.eq.s32.totalorder %s25, 0
      %p66 = por %p64, %p65
      %p67 = scmp.ne.s32.totalorder %s59, %s61
      %p68 = scmp.eq.s32.totalorder %s30, 1
      %p69 = por %p67, %p68
      %p70 = scmp.ne.s32.totalorder %s61, %s62
      %p71 = scmp.eq.s32.totalorder %s30, 0
      %p72 = por %p70, %p71
      %p73 = scmp.ne.s32.totalorder %s61, %s62
      %p74 = scmp.eq.s32.totalorder %s31, 1
      %p75 = por %p73, %p74
      %p77 = scmp.ne.s32.totalorder %s62, %s76
      %p78 = scmp.eq.s32.totalorder %s31, 0
      %p79 = por %p77, %p78
      %s81 = sadd.s32 %s80, 1
      %p84 = scmp.eq.s32.totalorder %s25, 1
      %p85 = scmp.ne.s32.totalorder %s80, %s82
      %p86 = scmp.eq.s32.totalorder %s25, 0
      %p87 = por %p85, %p86
      %p88 = scmp.ne.s32.totalorder %s80, %s82
      %p89 = scmp.eq.s32.totalorder %s30, 1
      %p90 = por %p88, %p89
      %p91 = scmp.ne.s32.totalorder %s82, %s83
      %p92 = scmp.eq.s32.totalorder %s30, 0
      %p93 = por %p91, %p92
      %p94 = scmp.ne.s32.totalorder %s82, %s83
      %p95 = scmp.eq.s32.totalorder %s31, 1
      %p96 = por %p94, %p95
      %p98 = scmp.ne.s32.totalorder %s83, %s97
      %p99 = scmp.eq.s32.totalorder %s31, 0
      %p100 = por %p98, %p99
      %s102 = sadd.s32 %s101, 1
      %p105 = scmp.eq.s32.totalorder %s25, 1
      %p106 = scmp.ne.s32.totalorder %s101, %s103
      %p107 = scmp.eq.s32.totalorder %s25, 0
      %p108 = por %p106, %p107
      %p109 = scmp.ne.s32.totalorder %s101, %s103
      %p110 = scmp.eq.s32.totalorder %s30, 1
      %p111 = por %p109, %p110
      %p112 = scmp.ne.s32.totalorder %s103, %s104
      %p113 = scmp.eq.s32.totalorder %s30, 0
      %p114 = por %p112, %p113
      %p115 = scmp.ne.s32.totalorder %s103, %s104
      %p116 = scmp.eq.s32.totalorder %s31, 1
      %p117 = por %p115, %p116
      %p119 = scmp.ne.s32.totalorder %s104, %s118
      %p120 = scmp.eq.s32.totalorder %s31, 0
      %p121 = por %p119, %p120
      %s123 = sadd.s32 %s122, 1
      %p126 = scmp.eq.s32.totalorder %s25, 1
      %p127 = scmp.ne.s32.totalorder %s122, %s124
      %p128 = scmp.eq.s32.totalorder %s25, 0
      %p129 = por %p127, %p128
      %p130 = scmp.ne.s32.totalorder %s122, %s124
      %p131 = scmp.eq.s32.totalorder %s30, 1
      %p132 = por %p130, %p131
      %p133 = scmp.ne.s32.totalorder %s124, %s125
      %p134 = scmp.eq.s32.totalorder %s30, 0
      %p135 = por %p133, %p134
      %p136 = scmp.ne.s32.totalorder %s124, %s125
      %p137 = scmp.eq.s32.totalorder %s31, 1
      %p138 = por %p136, %p137
      %p140 = scmp.ne.s32.totalorder %s125, %s139
      %p141 = scmp.eq.s32.totalorder %s31, 0
      %p142 = por %p140, %p141
      %s144 = sadd.s32 %s143, 1
      %p147 = scmp.eq.s32.totalorder %s25, 1
      %p148 = scmp.ne.s32.totalorder %s143, %s145
      %p149 = scmp.eq.s32.totalorder %s25, 0
      %p150 = por %p148, %p149
      %p151 = scmp.ne.s32.totalorder %s143, %s145
      %p152 = scmp.eq.s32.totalorder %s30, 1
      %p153 = por %p151, %p152
      %p154 = scmp.ne.s32.totalorder %s145, %s146
      %p155 = scmp.eq.s32.totalorder %s30, 0
      %p156 = por %p154, %p155
      %p157 = scmp.ne.s32.totalorder %s145, %s146
      %p158 = scmp.eq.s32.totalorder %s31, 1
      %p159 = por %p157, %p158
      %p161 = scmp.ne.s32.totalorder %s146, %s160
      %p162 = scmp.eq.s32.totalorder %s31, 0
      %p163 = por %p161, %p162
      %s165 = sadd.s32 %s164, 1
      %p168 = scmp.eq.s32.totalorder %s25, 1
      %p169 = scmp.ne.s32.totalorder %s164, %s166
      %p170 = scmp.eq.s32.totalorder %s25, 0
      %p171 = por %p169, %p170
      %p172 = scmp.ne.s32.totalorder %s164, %s166
      %p173 = scmp.eq.s32.totalorder %s30, 1
      %p174 = por %p172, %p173
      %p175 = scmp.ne.s32.totalorder %s166, %s167
      %p176 = scmp.eq.s32.totalorder %s30, 0
      %p177 = por %p175, %p176
      %p178 = scmp.ne.s32.totalorder %s166, %s167
      %p179 = scmp.eq.s32.totalorder %s31, 1
      %p180 = por %p178, %p179
      %p182 = scmp.ne.s32.totalorder %s167, %s181
      %p183 = scmp.eq.s32.totalorder %s31, 0
      %p184 = por %p182, %p183
      %s186 = sadd.s32 %s185, 1
      %p189 = scmp.eq.s32.totalorder %s25, 1
      %p190 = scmp.ne.s32.totalorder %s185, %s187
      %p191 = scmp.eq.s32.totalorder %s25, 0
      %p192 = por %p190, %p191
      %p193 = scmp.ne.s32.totalorder %s185, %s187
      %p194 = scmp.eq.s32.totalorder %s30, 1
      %p195 = por %p193, %p194
      %p196 = scmp.ne.s32.totalorder %s187, %s188
      %p197 = scmp.eq.s32.totalorder %s30, 0
      %p198 = por %p196, %p197
      %p199 = scmp.ne.s32.totalorder %s187, %s188
      %p200 = scmp.eq.s32.totalorder %s31, 1
      %p201 = por %p199, %p200
      %p203 = scmp.ne.s32.totalorder %s188, %s202
      %p204 = scmp.eq.s32.totalorder %s31, 0
      %p205 = por %p203, %p204
      %s207 = sadd.s32 %s206, 1
      %p210 = scmp.eq.s32.totalorder %s25, 1
      %p211 = scmp.ne.s32.totalorder %s206, %s208
      %p212 = scmp.eq.s32.totalorder %s25, 0
      %p213 = por %p211, %p212
      %p214 = scmp.ne.s32.totalorder %s206, %s208
      %p215 = scmp.eq.s32.totalorder %s30, 1
      %p216 = por %p214, %p215
      %p217 = scmp.ne.s32.totalorder %s208, %s209
      %p218 = scmp.eq.s32.totalorder %s30, 0
      %p219 = por %p217, %p218
      %p220 = scmp.ne.s32.totalorder %s208, %s209
      %p221 = scmp.eq.s32.totalorder %s31, 1
      %p222 = por %p220, %p221
      %p224 = scmp.ne.s32.totalorder %s209, %s223
      %p225 = scmp.eq.s32.totalorder %s31, 0
      %p226 = por %p224, %p225
      %s228 = sadd.s32 %s227, 1
      %p231 = scmp.eq.s32.totalorder %s25, 1
      %p232 = scmp.ne.s32.totalorder %s227, %s229
      %p233 = scmp.eq.s32.totalorder %s25, 0
      %p234 = por %p232, %p233
      %p235 = scmp.ne.s32.totalorder %s227, %s229
      %p236 = scmp.eq.s32.totalorder %s30, 1
      %p237 = por %p235, %p236
      %p238 = scmp.ne.s32.totalorder %s229, %s230
      %p239 = scmp.eq.s32.totalorder %s30, 0
      %p240 = por %p238, %p239
      %p241 = scmp.ne.s32.totalorder %s229, %s230
      %p242 = scmp.eq.s32.totalorder %s31, 1
      %p243 = por %p241, %p242
      %p245 = scmp.ne.s32.totalorder %s230, %s244
      %p246 = scmp.eq.s32.totalorder %s31, 0
      %p247 = por %p245, %p246
      %s249 = sadd.s32 %s248, 1
      %p252 = scmp.eq.s32.totalorder %s25, 1
      %p253 = scmp.ne.s32.totalorder %s248, %s250
      %p254 = scmp.eq.s32.totalorder %s25, 0
      %p255 = por %p253, %p254
      %p256 = scmp.ne.s32.totalorder %s248, %s250
      %p257 = scmp.eq.s32.totalorder %s30, 1
      %p258 = por %p256, %p257
      %p259 = scmp.ne.s32.totalorder %s250, %s251
      %p260 = scmp.eq.s32.totalorder %s30, 0
      %p261 = por %p259, %p260
      %p262 = scmp.ne.s32.totalorder %s250, %s251
      %p263 = scmp.eq.s32.totalorder %s31, 1
      %p264 = por %p262, %p263
      %p266 = scmp.ne.s32.totalorder %s251, %s265
      %p267 = scmp.eq.s32.totalorder %s31, 0
      %p268 = por %p266, %p267
      %s270 = sadd.s32 %s269, 1
      %p273 = scmp.eq.s32.totalorder %s25, 1
      %p274 = scmp.ne.s32.totalorder %s269, %s271
      %p275 = scmp.eq.s32.totalorder %s25, 0
      %p276 = por %p274, %p275
      %p277 = scmp.ne.s32.totalorder %s269, %s271
      %p278 = scmp.eq.s32.totalorder %s30, 1
      %p279 = por %p277, %p278
      %p280 = scmp.ne.s32.totalorder %s271, %s272
      %p281 = scmp.eq.s32.totalorder %s30, 0
      %p282 = por %p280, %p281
      %p283 = scmp.ne.s32.totalorder %s271, %s272
      %p284 = scmp.eq.s32.totalorder %s31, 1
      %p285 = por %p283, %p284
      %p287 = scmp.ne.s32.totalorder %s272, %s286
      %p288 = scmp.eq.s32.totalorder %s31, 0
      %p289 = por %p287, %p288
      %s291 = sadd.s32 %s290, 1
      %p294 = scmp.eq.s32.totalorder %s25, 1
      %p295 = scmp.ne.s32.totalorder %s290, %s292
      %p296 = scmp.eq.s32.totalorder %s25, 0
      %p297 = por %p295, %p296
      %p298 = scmp.ne.s32.totalorder %s290, %s292
      %p299 = scmp.eq.s32.totalorder %s30, 1
      %p300 = por %p298, %p299
      %p301 = scmp.ne.s32.totalorder %s292, %s293
      %p302 = scmp.eq.s32.totalorder %s30, 0
      %p303 = por %p301, %p302
      %p304 = scmp.ne.s32.totalorder %s292, %s293
      %p305 = scmp.eq.s32.totalorder %s31, 1
      %p306 = por %p304, %p305
      %p308 = scmp.ne.s32.totalorder %s293, %s307
      %p309 = scmp.eq.s32.totalorder %s31, 0
      %p310 = por %p308, %p309
      %s311 = ssub.s32 %s25, %s32
      %p312 = scmp.eq.s32.totalorder %s311, 0
      %s314 = sadd.s32 %s313, 1
      %s315 = scalar_select %p312, %s313, %s314
      %p318 = pneg %p312
      %p319 = scmp.eq.s32.totalorder %s25, 1
      %p320 = por %p318, %p319
      %p321 = scmp.ne.s32.totalorder %s313, %s316
      %p322 = scmp.eq.s32.totalorder %s25, 0
      %p323 = por %p321, %p322
      %p324 = scmp.ne.s32.totalorder %s313, %s316
      %p325 = scmp.eq.s32.totalorder %s30, 1
      %p326 = por %p324, %p325
      %p327 = scmp.ne.s32.totalorder %s316, %s317
      %p328 = scmp.eq.s32.totalorder %s30, 0
      %p329 = por %p327, %p328
      %p330 = scmp.ne.s32.totalorder %s316, %s317
      %p331 = scmp.eq.s32.totalorder %s31, 1
      %p332 = por %p330, %p331
      %p334 = scmp.ne.s32.totalorder %s317, %s333
      %p335 = scmp.eq.s32.totalorder %s31, 0
      %p336 = por %p334, %p335
      %p337 = scmp.le.s32.totalorder 1, %s25
      %p338 = scmp.lt.s32.totalorder %s25, 3
      %p339 = pnand %p337, %p338
      %p340 = pneg %p339
      // Predicated region
      $region9: #{tpu_custom_call.1} parent=5 // pred_check
        _
      $region10: #{tpu_custom_call.1} parent=5 // pred_check_branch
        %342 = sbr.rel (%p339) target = $region12
      $region11: #{tpu_custom_call.1} parent=5 // pred_region
        %s343 = ssub.s32 %s25, 1
        // Predicated region
        $region13: #{tpu_custom_call.1} parent=11 // pred_check
          %p344 = pneg %p72
        $region14: #{tpu_custom_call.1} parent=11 // pred_check_branch
          %346 = sbr.rel (%p344) target = $region16
        $region15: #{tpu_custom_call.1} parent=11 // pred_region
          _
        $region16: #{tpu_custom_call.1} parent=11 // pred_fallthru
          _
        // Predicated region
        $region17: #{tpu_custom_call.1} parent=11 // pred_check
          %p347 = pneg %p93
        $region18: #{tpu_custom_call.1} parent=11 // pred_check_branch
          %349 = sbr.rel (%p347) target = $region20
        $region19: #{tpu_custom_call.1} parent=11 // pred_region
          _
        $region20: #{tpu_custom_call.1} parent=11 // pred_fallthru
          _
        // Predicated region
        $region21: #{tpu_custom_call.1} parent=11 // pred_check
          %p350 = pneg %p114
        $region22: #{tpu_custom_call.1} parent=11 // pred_check_branch
          %352 = sbr.rel (%p350) target = $region24
        $region23: #{tpu_custom_call.1} parent=11 // pred_region
          _
        $region24: #{tpu_custom_call.1} parent=11 // pred_fallthru
          _
        // Predicated region
        $region25: #{tpu_custom_call.1} parent=11 // pred_check
          %p353 = pneg %p135
        $region26: #{tpu_custom_call.1} parent=11 // pred_check_branch
          %355 = sbr.rel (%p353) target = $region28
        $region27: #{tpu_custom_call.1} parent=11 // pred_region
          %s357 = ssub.s32 16, 16
          %358 = vsyncadd [#allocation4], %s357
          %s360 = sshll.u32 [#allocation3], 4
          %s361 = int_to_ptr.vmem [resolvable:$true] %s360
          %363 = dma.hbm_to_vmem [thread:$0]  %s4, 16, %s361, [#allocation4]
        $region28: #{tpu_custom_call.1} parent=11 // pred_fallthru
          _
        // Predicated region
        $region29: #{tpu_custom_call.1} parent=11 // pred_check
          %p364 = pneg %p156
        $region30: #{tpu_custom_call.1} parent=11 // pred_check_branch
          %366 = sbr.rel (%p364) target = $region32
        $region31: #{tpu_custom_call.1} parent=11 // pred_region
          %s368 = ssub.s32 256, 256
          %369 = vsyncadd [#allocation7], %s368
          %s370 = sshll.u32 [#allocation6], 4
          %s371 = int_to_ptr.vmem [resolvable:$true] %s370
          %376 = dma.hbm_to_vmem [thread:$0]  %s5, 256, %s371, [#allocation7], 64, 64, 4
        $region32: #{tpu_custom_call.1} parent=11 // pred_fallthru
          _
        // Predicated region
        $region33: #{tpu_custom_call.1} parent=11 // pred_check
          %p377 = pneg %p177
        $region34: #{tpu_custom_call.1} parent=11 // pred_check_branch
          %379 = sbr.rel (%p377) target = $region36
        $region35: #{tpu_custom_call.1} parent=11 // pred_region
          %s381 = ssub.s32 16, 16
          %382 = vsyncadd [#allocation7], %s381
          %s384 = sshll.u32 [#allocation8], 4
          %s385 = int_to_ptr.vmem [resolvable:$true] %s384
          %387 = dma.hbm_to_vmem [thread:$0]  %s6, 16, %s385, [#allocation7]
        $region36: #{tpu_custom_call.1} parent=11 // pred_fallthru
          _
        // Predicated region
        $region37: #{tpu_custom_call.1} parent=11 // pred_check
          %p388 = pneg %p198
        $region38: #{tpu_custom_call.1} parent=11 // pred_check_branch
          %390 = sbr.rel (%p388) target = $region40
        $region39: #{tpu_custom_call.1} parent=11 // pred_region
          %s392 = ssub.s32 16, 16
          %393 = vsyncadd [#allocation10], %s392
          %s395 = sshll.u32 [#allocation9], 4
          %s396 = int_to_ptr.vmem [resolvable:$true] %s395
          %398 = dma.hbm_to_vmem [thread:$0]  %s7, 16, %s396, [#allocation10]
        $region40: #{tpu_custom_call.1} parent=11 // pred_fallthru
          _
        // Predicated region
        $region41: #{tpu_custom_call.1} parent=11 // pred_check
          %p399 = pneg %p219
        $region42: #{tpu_custom_call.1} parent=11 // pred_check_branch
          %401 = sbr.rel (%p399) target = $region44
        $region43: #{tpu_custom_call.1} parent=11 // pred_region
          %s403 = ssub.s32 16, 16
          %404 = vsyncadd [#allocation10], %s403
          %s406 = sshll.u32 [#allocation11], 4
          %s407 = int_to_ptr.vmem [resolvable:$true] %s406
          %409 = dma.hbm_to_vmem [thread:$0]  %s8, 16, %s407, [#allocation10]
        $region44: #{tpu_custom_call.1} parent=11 // pred_fallthru
          _
        // Predicated region
        $region45: #{tpu_custom_call.1} parent=11 // pred_check
          %p410 = pneg %p240
        $region46: #{tpu_custom_call.1} parent=11 // pred_check_branch
          %412 = sbr.rel (%p410) target = $region48
        $region47: #{tpu_custom_call.1} parent=11 // pred_region
          _
        $region48: #{tpu_custom_call.1} parent=11 // pred_fallthru
          _
        // Predicated region
        $region49: #{tpu_custom_call.1} parent=11 // pred_check
          %p413 = pneg %p261
        $region50: #{tpu_custom_call.1} parent=11 // pred_check_branch
          %415 = sbr.rel (%p413) target = $region52
        $region51: #{tpu_custom_call.1} parent=11 // pred_region
          _
        $region52: #{tpu_custom_call.1} parent=11 // pred_fallthru
          _
        // Predicated region
        $region53: #{tpu_custom_call.1} parent=11 // pred_check
          %p416 = pneg %p282
        $region54: #{tpu_custom_call.1} parent=11 // pred_check_branch
          %418 = sbr.rel (%p416) target = $region56
        $region55: #{tpu_custom_call.1} parent=11 // pred_region
          _
        $region56: #{tpu_custom_call.1} parent=11 // pred_fallthru
          _
        // Predicated region
        $region57: #{tpu_custom_call.1} parent=11 // pred_check
          %p419 = pneg %p303
        $region58: #{tpu_custom_call.1} parent=11 // pred_check_branch
          %421 = sbr.rel (%p419) target = $region60
        $region59: #{tpu_custom_call.1} parent=11 // pred_region
          _
        $region60: #{tpu_custom_call.1} parent=11 // pred_fallthru
          _
      $region12: #{tpu_custom_call.1} parent=5 // pred_fallthru
        _
      %p422 = scmp.lt.s32.totalorder %s25, 2
      // Predicated region
      $region61: #{tpu_custom_call.1} parent=5 // pred_check
        %p423 = pneg %p422
      $region62: #{tpu_custom_call.1} parent=5 // pred_check_branch
        %425 = sbr.rel (%p423) target = $region64
      $region63: #{tpu_custom_call.1} parent=5 // pred_region
        // Predicated region
        $region65: #{tpu_custom_call.1} parent=63 // pred_check
          %p426 = pneg %p45
        $region66: #{tpu_custom_call.1} parent=63 // pred_check_branch
          %428 = sbr.rel (%p426) target = $region68
        $region67: #{tpu_custom_call.1} parent=63 // pred_region
          %p429 = scmp.lt.s32.totalorder %s25, 1
          %s430 = scalar_select %p429, %s25, 1
          %s431 = smul.addr %s430, 2
          %s432 = smul.addr %s431, 8
          %s433 = scalar_lea.vmem %s0, %s432
        $region68: #{tpu_custom_call.1} parent=63 // pred_fallthru
          _
      $region64: #{tpu_custom_call.1} parent=5 // pred_fallthru
        _
      %p434 = scmp.le.s32.totalorder 1, %s25
      %p435 = scmp.lt.s32.totalorder %s25, 3
      %p436 = pnand %p434, %p435
      %p437 = pneg %p436
      // Predicated region
      $region69: #{tpu_custom_call.1} parent=5 // pred_check
        _
      $region70: #{tpu_custom_call.1} parent=5 // pred_check_branch
        %439 = sbr.rel (%p436) target = $region72
      $region71: #{tpu_custom_call.1} parent=5 // pred_region
        %s440 = ssub.s32 %s25, 1
        // Predicated region
        $region73: #{tpu_custom_call.1} parent=71 // pred_check
          %p441 = pneg %p135
        $region74: #{tpu_custom_call.1} parent=71 // pred_check_branch
          %443 = sbr.rel (%p441) target = $region76
        $region75: #{tpu_custom_call.1} parent=71 // pred_region
          %444 = dma.done [#allocation4], 16
        $region76: #{tpu_custom_call.1} parent=71 // pred_fallthru
          _
        // Predicated region
        $region77: #{tpu_custom_call.1} parent=71 // pred_check
          %p445 = pneg %p156
        $region78: #{tpu_custom_call.1} parent=71 // pred_check_branch
          %447 = sbr.rel (%p445) target = $region80
        $region79: #{tpu_custom_call.1} parent=71 // pred_region
          %448 = dma.done [#allocation7], 256
        $region80: #{tpu_custom_call.1} parent=71 // pred_fallthru
          _
        // Predicated region
        $region81: #{tpu_custom_call.1} parent=71 // pred_check
          %p449 = pneg %p177
        $region82: #{tpu_custom_call.1} parent=71 // pred_check_branch
          %451 = sbr.rel (%p449) target = $region84
        $region83: #{tpu_custom_call.1} parent=71 // pred_region
          %452 = dma.done [#allocation7], 16
        $region84: #{tpu_custom_call.1} parent=71 // pred_fallthru
          _
        // Predicated region
        $region85: #{tpu_custom_call.1} parent=71 // pred_check
          %p453 = pneg %p198
        $region86: #{tpu_custom_call.1} parent=71 // pred_check_branch
          %455 = sbr.rel (%p453) target = $region88
        $region87: #{tpu_custom_call.1} parent=71 // pred_region
          %456 = dma.done [#allocation10], 16
        $region88: #{tpu_custom_call.1} parent=71 // pred_fallthru
          _
        // Predicated region
        $region89: #{tpu_custom_call.1} parent=71 // pred_check
          %p457 = pneg %p219
        $region90: #{tpu_custom_call.1} parent=71 // pred_check_branch
          %459 = sbr.rel (%p457) target = $region92
        $region91: #{tpu_custom_call.1} parent=71 // pred_region
          %460 = dma.done [#allocation10], 16
        $region92: #{tpu_custom_call.1} parent=71 // pred_fallthru
          _
        %p461 = scmp.lt.s32.totalorder %s30, 1
        %s462 = scalar_select %p461, %s30, 1
        %s463 = smul.addr %s462, 2
        %s464 = smul.addr %s463, 8
        %s465 = scalar_lea.vmem %s0, %s464
        %p466 = pneg %p51
        %p467 = pneg %p48
        %p468 = pneg %p72
        %p469 = pneg %p69
        %p470 = pneg %p93
        %p471 = pneg %p90
        %p472 = pneg %p114
        %p473 = pneg %p111
        %p474 = pneg %p135
        %p475 = pneg %p132
        %p476 = pneg %p156
        %p477 = pneg %p153
        %p478 = pneg %p177
        %p479 = pneg %p174
        %p480 = pneg %p198
        %p481 = pneg %p195
        %p482 = pneg %p219
        %p483 = pneg %p216
        %p484 = pneg %p240
        %p485 = pneg %p237
        %p486 = pneg %p261
        %p487 = pneg %p258
        %p488 = pneg %p282
        %p489 = pneg %p279
        %p490 = pneg %p303
        %p491 = pneg %p300
        %p492 = pneg %p329
        %p493 = pneg %p326
        %s494 = sand.u32 %s316, 1
        %s495 = scalar_lea.sflag [#allocation5], %s494
        %s496 = sand.u32 %s316, 1
        %s497 = smul.addr %s496, 16
        %s498 = scalar_lea.vmem [#allocation12], %s497
        %p499 = scmp.lt.s32.totalorder %s30, 1
        %s500 = scalar_select %p499, %s30, 1
        %s501 = smul.addr %s500, 2
        %s502 = smul.addr %s501, 8
        %s503 = scalar_lea.vmem %s0, %s502
        %v505 = vld [vmem:[%s503] sm:$0xff]
        %v506 = vld [vmem:[%s503 + $0x8] sm:$0xff]
        %v507 = vld [vmem:[%s1] sm:$0x1]
        %v508 = vld [vmem:[%s2] sm:$0x1]
        %vm509 = vcmask 261120
        %v510 = vsel %vm509, %v505, 0.0
        %511 = vadd.xlane.f32.xlu0 %v510
        %v512 = vpop.xlane.xlu0 %511
        %v513 = vsel %vm509, %v506, 0.0
        %514 = vadd.xlane.f32.xlu0 %v513
        %v515 = vpop.xlane.xlu0 %514
        %v516 = vrcp.pop 32.0
        %v517 = vmul.f32 %v512, %v516
        %v518 = vmul.f32 %v515, %v516
        %v519 = vsub.f32 %v505, %v517
        %v520 = vsub.f32 %v506, %v518
        %v521 = vmul.f32 %v519, %v519
        %v522 = vmul.f32 %v520, %v520
        %v523 = vsel %vm509, %v521, 0.0
        %524 = vadd.xlane.f32.xlu0 %v523
        %v525 = vpop.xlane.xlu0 %524
        %v526 = vsel %vm509, %v522, 0.0
        %527 = vadd.xlane.f32.xlu0 %v526
        %v528 = vpop.xlane.xlu0 %527
        %v529 = vmul.f32 %v525, %v516
        %v530 = vmul.f32 %v528, %v516
        %v531 = vadd.f32 %v529, 1e-05
        %v532 = vadd.f32 %v530, 1e-05
        %v533 = vrsqrt.pop %v531
        %v534 = vrsqrt.pop %v532
        %v535 = vmul.f32 %v519, %v533
        %v536 = vmul.f32 %v520, %v534
        %v538 = vlaneseq
        %v539 = vshrl.u32 %v538, 7
        %v540 = vsub.s32 0, %v539
        %v541 = vrot.slane %v507, %v540
        %v543 = vmul.f32 %v535, %v541
        %v544 = vmul.f32 %v536, %v541
        %v546 = vlaneseq
        %v547 = vshrl.u32 %v546, 7
        %v548 = vsub.s32 0, %v547
        %v549 = vrot.slane %v508, %v548
        %v551 = vadd.f32 %v543, %v549
        %v552 = vadd.f32 %v544, %v549
        %v553 = vpack.c.bf16 %v552, %v551
        %v554 = vld [vmem:[%s3] sm:$0xf]
        %v555 = vld [vmem:[%s3 + $0x4] sm:$0xf]
        %v556 = vld [vmem:[%s3 + $0x8] sm:$0xf]
        %v557 = vld [vmem:[%s3 + $0xc] sm:$0xf]
        %v558 = vld [vmem:[#allocation3] sm:$0x1]
        %v560 = vlaneseq
        %v561 = vshrl.u32 %v560, 7
        %v562 = vsub.s32 0, %v561
        %v563 = vrot.slane %v558, %v562
        %v569 = vunpack.c.l.b16 %v554
        %v570 = vunpack.c.l.b16 %v555
        %v571 = vunpack.c.l.b16 %v556
        %v572 = vunpack.c.l.b16 %v557
        %v573 = vpack.c.b16 %v570, %v569
        %v574 = vpack.c.b16 %v572, %v571
        %v578 = vsel %vm509, %v553, 0
        %580 = vmatprep.subr.bf16.mxu0 0
        %581 = vmatpush1.bf16.msra.mxu0 %v573
        %582 = vmatprep.subr.bf16.mxu0 0
        %583 = vmatpush1.bf16.msra.mxu0 %v574
        %584 = vmatprep.subr.bf16.mxu0 0
        %585 = vmatpush1.bf16.msra.mxu0 0
        %586 = vmatprep.subr.bf16.mxu0 0
        %587 = vmatpush1.bf16.msra.mxu0 0
        %588 = vmatprep.subr.bf16.mxu0 0
        %589 = vmatpush1.bf16.msra.mxu0 0
        %590 = vmatprep.subr.bf16.mxu0 0
        %591 = vmatpush1.bf16.msra.mxu0 0
        %592 = vmatprep.subr.bf16.mxu0 0
        %593 = vmatpush1.bf16.msra.mxu0 0
        %594 = vmatprep.subr.bf16.mxu0 0
        %595 = vmatpush1.bf16.msra.mxu0 0
        %596 = vmatprep.subr.bf16.mxu0 0
        %597 = vmatpush1.bf16.msra.mxu0 0
        %598 = vmatprep.subr.bf16.mxu0 0
        %599 = vmatpush1.bf16.msra.mxu0 0
        %600 = vmatprep.subr.bf16.mxu0 0
        %601 = vmatpush1.bf16.msra.mxu0 0
        %602 = vmatprep.subr.bf16.mxu0 0
        %603 = vmatpush1.bf16.msra.mxu0 0
        %604 = vmatprep.subr.bf16.mxu0 0
        %605 = vmatpush1.bf16.msra.mxu0 0
        %606 = vmatprep.subr.bf16.mxu0 0
        %607 = vmatpush1.bf16.msra.mxu0 0
        %608 = vmatprep.subr.bf16.mxu0 0
        %609 = vmatpush1.bf16.msra.mxu0 0
        %610 = vmatprep.subr.bf16.mxu0 0
        %611 = vmatpush1.bf16.msra.mxu0 0
        %612 = vmatprep.mubr.bf16.mxu0 0
        %613 = vmatmul.mubr.bf16.gmra.mrb[0].mxu0 %v578
        %v614 = vpop.f32.mrb[0].mxu0
        %v615 = vadd.f32 %v563, %v614
        %v616 = vpop.f32.mrb[0].mxu0
        %v617 = vpop.f32.mrb[0].mxu0
        %v618 = vadd.f32 %v563, %v617
        %v619 = vpop.f32.mrb[0].mxu0
        %620 = vdwg.mxu0
        %v621 = vmul.f32 %v615, 0.35355338
        %v622 = vmul.f32 %v618, 0.35355338
        %v623 = vpack.c.bf16 %v622, %v621
        %v624 = vpack.c.bf16 %v618, %v615
        %626 = vrot.lane.b32.xlu0 %v624, 96
        %v627 = vpop.permute.xlu0 %626
        %vm628 = vcmask 64512
        %v630 = vsel %vm628, %v623, 0
        %v633 = vsel %vm628, %v627, 0
        %635 = vmatprep.subr.bf16.mxu0 0
        %636 = vmatpush1.bf16.xpose.msra.mxu0 %v633
        %637 = vmatprep.subr.bf16.mxu0 0
        %638 = vmatpush1.bf16.xpose.msra.mxu0 0
        %639 = vmatprep.subr.bf16.mxu0 0
        %640 = vmatpush1.bf16.xpose.msra.mxu0 0
        %641 = vmatprep.subr.bf16.mxu0 0
        %642 = vmatpush1.bf16.xpose.msra.mxu0 0
        %643 = vmatprep.subr.bf16.mxu0 0
        %644 = vmatpush1.bf16.xpose.msra.mxu0 0
        %645 = vmatprep.subr.bf16.mxu0 0
        %646 = vmatpush1.bf16.xpose.msra.mxu0 0
        %647 = vmatprep.subr.bf16.mxu0 0
        %648 = vmatpush1.bf16.xpose.msra.mxu0 0
        %649 = vmatprep.subr.bf16.mxu0 0
        %650 = vmatpush1.bf16.xpose.msra.mxu0 0
        %651 = vmatprep.subr.bf16.mxu0 0
        %652 = vmatpush1.bf16.xpose.msra.mxu0 0
        %653 = vmatprep.subr.bf16.mxu0 0
        %654 = vmatpush1.bf16.xpose.msra.mxu0 0
        %655 = vmatprep.subr.bf16.mxu0 0
        %656 = vmatpush1.bf16.xpose.msra.mxu0 0
        %657 = vmatprep.subr.bf16.mxu0 0
        %658 = vmatpush1.bf16.xpose.msra.mxu0 0
        %659 = vmatprep.subr.bf16.mxu0 0
        %660 = vmatpush1.bf16.xpose.msra.mxu0 0
        %661 = vmatprep.subr.bf16.mxu0 0
        %662 = vmatpush1.bf16.xpose.msra.mxu0 0
        %663 = vmatprep.subr.bf16.mxu0 0
        %664 = vmatpush1.bf16.xpose.msra.mxu0 0
        %665 = vmatprep.subr.bf16.mxu0 0
        %666 = vmatpush1.bf16.xpose.msra.mxu0 0
        %667 = vmatprep.mubr.bf16.mxu0 0
        %668 = vmatmul.mubr.bf16.gmra.mrb[0].mxu0 %v630
        %v669 = vpop.f32.mrb[0].mxu0
        %v670 = vadd.f32 0.0, %v669
        %v671 = vpop.f32.mrb[0].mxu0
        %v672 = vpop.f32.mrb[0].mxu0
        %v673 = vadd.f32 0.0, %v672
        %v674 = vpop.f32.mrb[0].mxu0
        %675 = vdwg.mxu0
        %vm676 = vcmask 130048
        %v677 = vsel %vm676, %v670, -inf
        %678 = vmax.xlane.f32.xlu0 %v677
        %v679 = vpop.xlane.xlu0 %678
        %v680 = vsel %vm676, %v673, -inf
        %681 = vmax.xlane.f32.xlu0 %v680
        %v682 = vpop.xlane.xlu0 %681
        %v683 = vsub.f32 %v670, %v679
        %v684 = vsub.f32 %v673, %v682
        %v685 = vmul.f32 %v683, 1.442695
        %v686 = vpow.pop %v685
        %v687 = vmul.f32 %v684, 1.442695
        %v688 = vpow.pop %v687
        %v689 = vsel %vm676, %v686, 0.0
        %690 = vadd.xlane.f32.xlu0 %v689
        %v691 = vpop.xlane.xlu0 %690
        %v692 = vsel %vm676, %v688, 0.0
        %693 = vadd.xlane.f32.xlu0 %v692
        %v694 = vpop.xlane.xlu0 %693
        %v695 = vpack.c.bf16 %v688, %v686
        %696 = vrot.lane.b32.xlu0 %v624, 64
        %v697 = vpop.permute.xlu0 %696
        %v700 = vsel %vm676, %v695, 0
        %702 = vmatprep.subr.bf16.mxu0 0
        %703 = vmatpush1.bf16.msra.mxu0 %v697
        %704 = vmatprep.subr.bf16.mxu0 0
        %705 = vmatpush1.bf16.msra.mxu0 0
        %706 = vmatprep.subr.bf16.mxu0 0
        %707 = vmatpush1.bf16.msra.mxu0 0
        %708 = vmatprep.subr.bf16.mxu0 0
        %709 = vmatpush1.bf16.msra.mxu0 0
        %710 = vmatprep.subr.bf16.mxu0 0
        %711 = vmatpush1.bf16.msra.mxu0 0
        %712 = vmatprep.subr.bf16.mxu0 0
        %713 = vmatpush1.bf16.msra.mxu0 0
        %714 = vmatprep.subr.bf16.mxu0 0
        %715 = vmatpush1.bf16.msra.mxu0 0
        %716 = vmatprep.subr.bf16.mxu0 0
        %717 = vmatpush1.bf16.msra.mxu0 0
        %718 = vmatprep.subr.bf16.mxu0 0
        %719 = vmatpush1.bf16.msra.mxu0 0
        %720 = vmatprep.subr.bf16.mxu0 0
        %721 = vmatpush1.bf16.msra.mxu0 0
        %722 = vmatprep.subr.bf16.mxu0 0
        %723 = vmatpush1.bf16.msra.mxu0 0
        %724 = vmatprep.subr.bf16.mxu0 0
        %725 = vmatpush1.bf16.msra.mxu0 0
        %726 = vmatprep.subr.bf16.mxu0 0
        %727 = vmatpush1.bf16.msra.mxu0 0
        %728 = vmatprep.subr.bf16.mxu0 0
        %729 = vmatpush1.bf16.msra.mxu0 0
        %730 = vmatprep.subr.bf16.mxu0 0
        %731 = vmatpush1.bf16.msra.mxu0 0
        %732 = vmatprep.subr.bf16.mxu0 0
        %733 = vmatpush1.bf16.msra.mxu0 0
        %734 = vmatprep.mubr.bf16.mxu0 0
        %735 = vmatmul.mubr.bf16.gmra.mrb[0].mxu0 %v700
        %v736 = vpop.f32.mrb[0].mxu0
        %v737 = vadd.f32 0.0, %v736
        %v738 = vpop.f32.mrb[0].mxu0
        %v739 = vpop.f32.mrb[0].mxu0
        %v740 = vadd.f32 0.0, %v739
        %v741 = vpop.f32.mrb[0].mxu0
        %742 = vdwg.mxu0
        %v743 = vrcp.pop %v691
        %v744 = vmul.f32 %v737, %v743
        %v745 = vrcp.pop %v694
        %v746 = vmul.f32 %v740, %v745
        %v747 = vpack.c.bf16 %v746, %v744
        %748 = vst.msk [vmem:[#allocation2] sm:$0xff] %vm628, %v747
        %750 = vrot.lane.b32.xlu0 %v623, 120
        %v751 = vpop.permute.xlu0 %750
        %752 = vrot.lane.b32.xlu0 %v624, 88
        %v753 = vpop.permute.xlu0 %752
        %v755 = vsel %vm628, %v751, 0
        %v758 = vsel %vm628, %v753, 0
        %760 = vmatprep.subr.bf16.mxu0 0
        %761 = vmatpush1.bf16.xpose.msra.mxu0 %v758
        %762 = vmatprep.subr.bf16.mxu0 0
        %763 = vmatpush1.bf16.xpose.msra.mxu0 0
        %764 = vmatprep.subr.bf16.mxu0 0
        %765 = vmatpush1.bf16.xpose.msra.mxu0 0
        %766 = vmatprep.subr.bf16.mxu0 0
        %767 = vmatpush1.bf16.xpose.msra.mxu0 0
        %768 = vmatprep.subr.bf16.mxu0 0
        %769 = vmatpush1.bf16.xpose.msra.mxu0 0
        %770 = vmatprep.subr.bf16.mxu0 0
        %771 = vmatpush1.bf16.xpose.msra.mxu0 0
        %772 = vmatprep.subr.bf16.mxu0 0
        %773 = vmatpush1.bf16.xpose.msra.mxu0 0
        %774 = vmatprep.subr.bf16.mxu0 0
        %775 = vmatpush1.bf16.xpose.msra.mxu0 0
        %776 = vmatprep.subr.bf16.mxu0 0
        %777 = vmatpush1.bf16.xpose.msra.mxu0 0
        %778 = vmatprep.subr.bf16.mxu0 0
        %779 = vmatpush1.bf16.xpose.msra.mxu0 0
        %780 = vmatprep.subr.bf16.mxu0 0
        %781 = vmatpush1.bf16.xpose.msra.mxu0 0
        %782 = vmatprep.subr.bf16.mxu0 0
        %783 = vmatpush1.bf16.xpose.msra.mxu0 0
        %784 = vmatprep.subr.bf16.mxu0 0
        %785 = vmatpush1.bf16.xpose.msra.mxu0 0
        %786 = vmatprep.subr.bf16.mxu0 0
        %787 = vmatpush1.bf16.xpose.msra.mxu0 0
        %788 = vmatprep.subr.bf16.mxu0 0
        %789 = vmatpush1.bf16.xpose.msra.mxu0 0
        %790 = vmatprep.subr.bf16.mxu0 0
        %791 = vmatpush1.bf16.xpose.msra.mxu0 0
        %792 = vmatprep.mubr.bf16.mxu0 0
        %793 = vmatmul.mubr.bf16.gmra.mrb[0].mxu0 %v755
        %v794 = vpop.f32.mrb[0].mxu0
        %v795 = vadd.f32 0.0, %v794
        %v796 = vpop.f32.mrb[0].mxu0
        %v797 = vpop.f32.mrb[0].mxu0
        %v798 = vadd.f32 0.0, %v797
        %v799 = vpop.f32.mrb[0].mxu0
        %800 = vdwg.mxu0
        %v801 = vsel %vm676, %v795, -inf
        %802 = vmax.xlane.f32.xlu0 %v801
        %v803 = vpop.xlane.xlu0 %802
        %v804 = vsel %vm676, %v798, -inf
        %805 = vmax.xlane.f32.xlu0 %v804
        %v806 = vpop.xlane.xlu0 %805
        %v807 = vsub.f32 %v795, %v803
        %v808 = vsub.f32 %v798, %v806
        %v809 = vmul.f32 %v807, 1.442695
        %v810 = vpow.pop %v809
        %v811 = vmul.f32 %v808, 1.442695
        %v812 = vpow.pop %v811
        %v813 = vsel %vm676, %v810, 0.0
        %814 = vadd.xlane.f32.xlu0 %v813
        %v815 = vpop.xlane.xlu0 %814
        %v816 = vsel %vm676, %v812, 0.0
        %817 = vadd.xlane.f32.xlu0 %v816
        %v818 = vpop.xlane.xlu0 %817
        %v819 = vpack.c.bf16 %v812, %v810
        %820 = vrot.lane.b32.xlu0 %v624, 56
        %v821 = vpop.permute.xlu0 %820
        %v824 = vsel %vm676, %v819, 0
        %826 = vmatprep.subr.bf16.mxu0 0
        %827 = vmatpush1.bf16.msra.mxu0 %v821
        %828 = vmatprep.subr.bf16.mxu0 0
        %829 = vmatpush1.bf16.msra.mxu0 0
        %830 = vmatprep.subr.bf16.mxu0 0
        %831 = vmatpush1.bf16.msra.mxu0 0
        %832 = vmatprep.subr.bf16.mxu0 0
        %833 = vmatpush1.bf16.msra.mxu0 0
        %834 = vmatprep.subr.bf16.mxu0 0
        %835 = vmatpush1.bf16.msra.mxu0 0
        %836 = vmatprep.subr.bf16.mxu0 0
        %837 = vmatpush1.bf16.msra.mxu0 0
        %838 = vmatprep.subr.bf16.mxu0 0
        %839 = vmatpush1.bf16.msra.mxu0 0
        %840 = vmatprep.subr.bf16.mxu0 0
        %841 = vmatpush1.bf16.msra.mxu0 0
        %842 = vmatprep.subr.bf16.mxu0 0
        %843 = vmatpush1.bf16.msra.mxu0 0
        %844 = vmatprep.subr.bf16.mxu0 0
        %845 = vmatpush1.bf16.msra.mxu0 0
        %846 = vmatprep.subr.bf16.mxu0 0
        %847 = vmatpush1.bf16.msra.mxu0 0
        %848 = vmatprep.subr.bf16.mxu0 0
        %849 = vmatpush1.bf16.msra.mxu0 0
        %850 = vmatprep.subr.bf16.mxu0 0
        %851 = vmatpush1.bf16.msra.mxu0 0
        %852 = vmatprep.subr.bf16.mxu0 0
        %853 = vmatpush1.bf16.msra.mxu0 0
        %854 = vmatprep.subr.bf16.mxu0 0
        %855 = vmatpush1.bf16.msra.mxu0 0
        %856 = vmatprep.subr.bf16.mxu0 0
        %857 = vmatpush1.bf16.msra.mxu0 0
        %858 = vmatprep.mubr.bf16.mxu0 0
        %859 = vmatmul.mubr.bf16.gmra.mrb[0].mxu0 %v824
        %v860 = vpop.f32.mrb[0].mxu0
        %v861 = vadd.f32 0.0, %v860
        %v862 = vpop.f32.mrb[0].mxu0
        %v863 = vpop.f32.mrb[0].mxu0
        %v864 = vadd.f32 0.0, %v863
        %v865 = vpop.f32.mrb[0].mxu0
        %866 = vdwg.mxu0
        %v867 = vrcp.pop %v815
        %v868 = vmul.f32 %v861, %v867
        %v869 = vrcp.pop %v818
        %v870 = vmul.f32 %v864, %v869
        %v871 = vpack.c.bf16 %v870, %v868
        %873 = vrot.lane.b32.xlu0 %v871, 8
        %v874 = vpop.permute.xlu0 %873
        %vm876 = vcmask 130112
        %877 = vst.msk [vmem:[#allocation2] sm:$0xff] %vm876, %v874
        %878 = vrot.lane.b32.xlu0 %v623, 112
        %v879 = vpop.permute.xlu0 %878
        %880 = vrot.lane.b32.xlu0 %v624, 80
        %v881 = vpop.permute.xlu0 %880
        %v883 = vsel %vm628, %v879, 0
        %v886 = vsel %vm628, %v881, 0
        %888 = vmatprep.subr.bf16.mxu0 0
        %889 = vmatpush1.bf16.xpose.msra.mxu0 %v886
        %890 = vmatprep.subr.bf16.mxu0 0
        %891 = vmatpush1.bf16.xpose.msra.mxu0 0
        %892 = vmatprep.subr.bf16.mxu0 0
        %893 = vmatpush1.bf16.xpose.msra.mxu0 0
        %894 = vmatprep.subr.bf16.mxu0 0
        %895 = vmatpush1.bf16.xpose.msra.mxu0 0
        %896 = vmatprep.subr.bf16.mxu0 0
        %897 = vmatpush1.bf16.xpose.msra.mxu0 0
        %898 = vmatprep.subr.bf16.mxu0 0
        %899 = vmatpush1.bf16.xpose.msra.mxu0 0
        %900 = vmatprep.subr.bf16.mxu0 0
        %901 = vmatpush1.bf16.xpose.msra.mxu0 0
        %902 = vmatprep.subr.bf16.mxu0 0
        %903 = vmatpush1.bf16.xpose.msra.mxu0 0
        %904 = vmatprep.subr.bf16.mxu0 0
        %905 = vmatpush1.bf16.xpose.msra.mxu0 0
        %906 = vmatprep.subr.bf16.mxu0 0
        %907 = vmatpush1.bf16.xpose.msra.mxu0 0
        %908 = vmatprep.subr.bf16.mxu0 0
        %909 = vmatpush1.bf16.xpose.msra.mxu0 0
        %910 = vmatprep.subr.bf16.mxu0 0
        %911 = vmatpush1.bf16.xpose.msra.mxu0 0
        %912 = vmatprep.subr.bf16.mxu0 0
        %913 = vmatpush1.bf16.xpose.msra.mxu0 0
        %914 = vmatprep.subr.bf16.mxu0 0
        %915 = vmatpush1.bf16.xpose.msra.mxu0 0
        %916 = vmatprep.subr.bf16.mxu0 0
        %917 = vmatpush1.bf16.xpose.msra.mxu0 0
        %918 = vmatprep.subr.bf16.mxu0 0
        %919 = vmatpush1.bf16.xpose.msra.mxu0 0
        %920 = vmatprep.mubr.bf16.mxu0 0
        %921 = vmatmul.mubr.bf16.gmra.mrb[0].mxu0 %v883
        %v922 = vpop.f32.mrb[0].mxu0
        %v923 = vadd.f32 0.0, %v922
        %v924 = vpop.f32.mrb[0].mxu0
        %v925 = vpop.f32.mrb[0].mxu0
        %v926 = vadd.f32 0.0, %v925
        %v927 = vpop.f32.mrb[0].mxu0
        %928 = vdwg.mxu0
        %v929 = vsel %vm676, %v923, -inf
        %930 = vmax.xlane.f32.xlu0 %v929
        %v931 = vpop.xlane.xlu0 %930
        %v932 = vsel %vm676, %v926, -inf
        %933 = vmax.xlane.f32.xlu0 %v932
        %v934 = vpop.xlane.xlu0 %933
        %v935 = vsub.f32 %v923, %v931
        %v936 = vsub.f32 %v926, %v934
        %v937 = vmul.f32 %v935, 1.442695
        %v938 = vpow.pop %v937
        %v939 = vmul.f32 %v936, 1.442695
        %v940 = vpow.pop %v939
        %v941 = vsel %vm676, %v938, 0.0
        %942 = vadd.xlane.f32.xlu0 %v941
        %v943 = vpop.xlane.xlu0 %942
        %v944 = vsel %vm676, %v940, 0.0
        %945 = vadd.xlane.f32.xlu0 %v944
        %v946 = vpop.xlane.xlu0 %945
        %v947 = vpack.c.bf16 %v940, %v938
        %948 = vrot.lane.b32.xlu0 %v624, 48
        %v949 = vpop.permute.xlu0 %948
        %v952 = vsel %vm676, %v947, 0
        %954 = vmatprep.subr.bf16.mxu0 0
        %955 = vmatpush1.bf16.msra.mxu0 %v949
        %956 = vmatprep.subr.bf16.mxu0 0
        %957 = vmatpush1.bf16.msra.mxu0 0
        %958 = vmatprep.subr.bf16.mxu0 0
        %959 = vmatpush1.bf16.msra.mxu0 0
        %960 = vmatprep.subr.bf16.mxu0 0
        %961 = vmatpush1.bf16.msra.mxu0 0
        %962 = vmatprep.subr.bf16.mxu0 0
        %963 = vmatpush1.bf16.msra.mxu0 0
        %964 = vmatprep.subr.bf16.mxu0 0
        %965 = vmatpush1.bf16.msra.mxu0 0
        %966 = vmatprep.subr.bf16.mxu0 0
        %967 = vmatpush1.bf16.msra.mxu0 0
        %968 = vmatprep.subr.bf16.mxu0 0
        %969 = vmatpush1.bf16.msra.mxu0 0
        %970 = vmatprep.subr.bf16.mxu0 0
        %971 = vmatpush1.bf16.msra.mxu0 0
        %972 = vmatprep.subr.bf16.mxu0 0
        %973 = vmatpush1.bf16.msra.mxu0 0
        %974 = vmatprep.subr.bf16.mxu0 0
        %975 = vmatpush1.bf16.msra.mxu0 0
        %976 = vmatprep.subr.bf16.mxu0 0
        %977 = vmatpush1.bf16.msra.mxu0 0
        %978 = vmatprep.subr.bf16.mxu0 0
        %979 = vmatpush1.bf16.msra.mxu0 0
        %980 = vmatprep.subr.bf16.mxu0 0
        %981 = vmatpush1.bf16.msra.mxu0 0
        %982 = vmatprep.subr.bf16.mxu0 0
        %983 = vmatpush1.bf16.msra.mxu0 0
        %984 = vmatprep.subr.bf16.mxu0 0
        %985 = vmatpush1.bf16.msra.mxu0 0
        %986 = vmatprep.mubr.bf16.mxu0 0
        %987 = vmatmul.mubr.bf16.gmra.mrb[0].mxu0 %v952
        %v988 = vpop.f32.mrb[0].mxu0
        %v989 = vadd.f32 0.0, %v988
        %v990 = vpop.f32.mrb[0].mxu0
        %v991 = vpop.f32.mrb[0].mxu0
        %v992 = vadd.f32 0.0, %v991
        %v993 = vpop.f32.mrb[0].mxu0
        %994 = vdwg.mxu0
        %v995 = vrcp.pop %v943
        %v996 = vmul.f32 %v989, %v995
        %v997 = vrcp.pop %v946
        %v998 = vmul.f32 %v992, %v997
        %v999 = vpack.c.bf16 %v998, %v996
        %1001 = vrot.lane.b32.xlu0 %v999, 16
        %v1002 = vpop.permute.xlu0 %1001
        %vm1004 = vcmask 195712
        %1005 = vst.msk [vmem:[#allocation2] sm:$0xff] %vm1004, %v1002
        %1006 = vrot.lane.b32.xlu0 %v623, 104
        %v1007 = vpop.permute.xlu0 %1006
        %1008 = vrot.lane.b32.xlu0 %v624, 72
        %v1009 = vpop.permute.xlu0 %1008
        %v1011 = vsel %vm628, %v1007, 0
        %v1014 = vsel %vm628, %v1009, 0
        %1016 = vmatprep.subr.bf16.mxu0 0
        %1017 = vmatpush1.bf16.xpose.msra.mxu0 %v1014
        %1018 = vmatprep.subr.bf16.mxu0 0
        %1019 = vmatpush1.bf16.xpose.msra.mxu0 0
        %1020 = vmatprep.subr.bf16.mxu0 0
        %1021 = vmatpush1.bf16.xpose.msra.mxu0 0
        %1022 = vmatprep.subr.bf16.mxu0 0
        %1023 = vmatpush1.bf16.xpose.msra.mxu0 0
        %1024 = vmatprep.subr.bf16.mxu0 0
        %1025 = vmatpush1.bf16.xpose.msra.mxu0 0
        %1026 = vmatprep.subr.bf16.mxu0 0
        %1027 = vmatpush1.bf16.xpose.msra.mxu0 0
        %1028 = vmatprep.subr.bf16.mxu0 0
        %1029 = vmatpush1.bf16.xpose.msra.mxu0 0
        %1030 = vmatprep.subr.bf16.mxu0 0
        %1031 = vmatpush1.bf16.xpose.msra.mxu0 0
        %1032 = vmatprep.subr.bf16.mxu0 0
        %1033 = vmatpush1.bf16.xpose.msra.mxu0 0
        %1034 = vmatprep.subr.bf16.mxu0 0
        %1035 = vmatpush1.bf16.xpose.msra.mxu0 0
        %1036 = vmatprep.subr.bf16.mxu0 0
        %1037 = vmatpush1.bf16.xpose.msra.mxu0 0
        %1038 = vmatprep.subr.bf16.mxu0 0
        %1039 = vmatpush1.bf16.xpose.msra.mxu0 0
        %1040 = vmatprep.subr.bf16.mxu0 0
        %1041 = vmatpush1.bf16.xpose.msra.mxu0 0
        %1042 = vmatprep.subr.bf16.mxu0 0
        %1043 = vmatpush1.bf16.xpose.msra.mxu0 0
        %1044 = vmatprep.subr.bf16.mxu0 0
        %1045 = vmatpush1.bf16.xpose.msra.mxu0 0
        %1046 = vmatprep.subr.bf16.mxu0 0
        %1047 = vmatpush1.bf16.xpose.msra.mxu0 0
        %1048 = vmatprep.mubr.bf16.mxu0 0
        %1049 = vmatmul.mubr.bf16.gmra.mrb[0].mxu0 %v1011
        %v1050 = vpop.f32.mrb[0].mxu0
        %v1051 = vadd.f32 0.0, %v1050
        %v1052 = vpop.f32.mrb[0].mxu0
        %v1053 = vpop.f32.mrb[0].mxu0
        %v1054 = vadd.f32 0.0, %v1053
        %v1055 = vpop.f32.mrb[0].mxu0
        %1056 = vdwg.mxu0
        %v1057 = vsel %vm676, %v1051, -inf
        %1058 = vmax.xlane.f32.xlu0 %v1057
        %v1059 = vpop.xlane.xlu0 %1058
        %v1060 = vsel %vm676, %v1054, -inf
        %1061 = vmax.xlane.f32.xlu0 %v1060
        %v1062 = vpop.xlane.xlu0 %1061
        %v1063 = vsub.f32 %v1051, %v1059
        %v1064 = vsub.f32 %v1054, %v1062
        %v1065 = vmul.f32 %v1063, 1.442695
        %v1066 = vpow.pop %v1065
        %v1067 = vmul.f32 %v1064, 1.442695
        %v1068 = vpow.pop %v1067
        %v1069 = vsel %vm676, %v1066, 0.0
        %1070 = vadd.xlane.f32.xlu0 %v1069
        %v1071 = vpop.xlane.xlu0 %1070
        %v1072 = vsel %vm676, %v1068, 0.0
        %1073 = vadd.xlane.f32.xlu0 %v1072
        %v1074 = vpop.xlane.xlu0 %1073
        %v1075 = vpack.c.bf16 %v1068, %v1066
        %1076 = vrot.lane.b32.xlu0 %v624, 40
        %v1077 = vpop.permute.xlu0 %1076
        %v1080 = vsel %vm676, %v1075, 0
        %1082 = vmatprep.subr.bf16.mxu0 0
        %1083 = vmatpush1.bf16.msra.mxu0 %v1077
        %1084 = vmatprep.subr.bf16.mxu0 0
        %1085 = vmatpush1.bf16.msra.mxu0 0
        %1086 = vmatprep.subr.bf16.mxu0 0
        %1087 = vmatpush1.bf16.msra.mxu0 0
        %1088 = vmatprep.subr.bf16.mxu0 0
        %1089 = vmatpush1.bf16.msra.mxu0 0
        %1090 = vmatprep.subr.bf16.mxu0 0
        %1091 = vmatpush1.bf16.msra.mxu0 0
        %1092 = vmatprep.subr.bf16.mxu0 0
        %1093 = vmatpush1.bf16.msra.mxu0 0
        %1094 = vmatprep.subr.bf16.mxu0 0
        %1095 = vmatpush1.bf16.msra.mxu0 0
        %1096 = vmatprep.subr.bf16.mxu0 0
        %1097 = vmatpush1.bf16.msra.mxu0 0
        %1098 = vmatprep.subr.bf16.mxu0 0
        %1099 = vmatpush1.bf16.msra.mxu0 0
        %1100 = vmatprep.subr.bf16.mxu0 0
        %1101 = vmatpush1.bf16.msra.mxu0 0
        %1102 = vmatprep.subr.bf16.mxu0 0
        %1103 = vmatpush1.bf16.msra.mxu0 0
        %1104 = vmatprep.subr.bf16.mxu0 0
        %1105 = vmatpush1.bf16.msra.mxu0 0
        %1106 = vmatprep.subr.bf16.mxu0 0
        %1107 = vmatpush1.bf16.msra.mxu0 0
        %1108 = vmatprep.subr.bf16.mxu0 0
        %1109 = vmatpush1.bf16.msra.mxu0 0
        %1110 = vmatprep.subr.bf16.mxu0 0
        %1111 = vmatpush1.bf16.msra.mxu0 0
        %1112 = vmatprep.subr.bf16.mxu0 0
        %1113 = vmatpush1.bf16.msra.mxu0 0
        %1114 = vmatprep.mubr.bf16.mxu0 0
        %1115 = vmatmul.mubr.bf16.gmra.mrb[0].mxu0 %v1080
        %v1116 = vpop.f32.mrb[0].mxu0
        %v1117 = vadd.f32 0.0, %v1116
        %v1118 = vpop.f32.mrb[0].mxu0
        %v1119 = vpop.f32.mrb[0].mxu0
        %v1120 = vadd.f32 0.0, %v1119
        %v1121 = vpop.f32.mrb[0].mxu0
        %1122 = vdwg.mxu0
        %v1123 = vrcp.pop %v1071
        %v1124 = vmul.f32 %v1117, %v1123
        %v1125 = vrcp.pop %v1074
        %v1126 = vmul.f32 %v1120, %v1125
        %v1127 = vpack.c.bf16 %v1126, %v1124
        %1129 = vrot.lane.b32.xlu0 %v1127, 24
        %v1130 = vpop.permute.xlu0 %1129
        %vm1132 = vcmask 261312
        %1133 = vst.msk [vmem:[#allocation2] sm:$0xff] %vm1132, %v1130
        %v1134 = vld [vmem:[#allocation2] sm:$0xff]
        %v1135 = vld [vmem:[#allocation6] sm:$0xf]
        %v1136 = vld [vmem:[#allocation6 + $0x4] sm:$0xf]
        %v1137 = vld [vmem:[#allocation6 + $0x8] sm:$0xf]
        %v1138 = vld [vmem:[#allocation6 + $0xc] sm:$0xf]
        %v1139 = vld [vmem:[#allocation8] sm:$0x1]
        %v1141 = vlaneseq
        %v1142 = vshrl.u32 %v1141, 7
        %v1143 = vsub.s32 0, %v1142
        %v1144 = vrot.slane %v1139, %v1143
        %v1150 = vunpack.c.l.b16 %v1135
        %v1151 = vunpack.c.l.b16 %v1136
        %v1152 = vunpack.c.l.b16 %v1137
        %v1153 = vunpack.c.l.b16 %v1138
        %v1154 = vpack.c.b16 %v1151, %v1150
        %v1155 = vpack.c.b16 %v1153, %v1152
        %v1159 = vsel %vm509, %v1134, 0
        %1161 = vmatprep.subr.bf16.mxu0 0
        %1162 = vmatpush1.bf16.msra.mxu0 %v1154
        %1163 = vmatprep.subr.bf16.mxu0 0
        %1164 = vmatpush1.bf16.msra.mxu0 %v1155
        %1165 = vmatprep.subr.bf16.mxu0 0
        %1166 = vmatpush1.bf16.msra.mxu0 0
        %1167 = vmatprep.subr.bf16.mxu0 0
        %1168 = vmatpush1.bf16.msra.mxu0 0
        %1169 = vmatprep.subr.bf16.mxu0 0
        %1170 = vmatpush1.bf16.msra.mxu0 0
        %1171 = vmatprep.subr.bf16.mxu0 0
        %1172 = vmatpush1.bf16.msra.mxu0 0
        %1173 = vmatprep.subr.bf16.mxu0 0
        %1174 = vmatpush1.bf16.msra.mxu0 0
        %1175 = vmatprep.subr.bf16.mxu0 0
        %1176 = vmatpush1.bf16.msra.mxu0 0
        %1177 = vmatprep.subr.bf16.mxu0 0
        %1178 = vmatpush1.bf16.msra.mxu0 0
        %1179 = vmatprep.subr.bf16.mxu0 0
        %1180 = vmatpush1.bf16.msra.mxu0 0
        %1181 = vmatprep.subr.bf16.mxu0 0
        %1182 = vmatpush1.bf16.msra.mxu0 0
        %1183 = vmatprep.subr.bf16.mxu0 0
        %1184 = vmatpush1.bf16.msra.mxu0 0
        %1185 = vmatprep.subr.bf16.mxu0 0
        %1186 = vmatpush1.bf16.msra.mxu0 0
        %1187 = vmatprep.subr.bf16.mxu0 0
        %1188 = vmatpush1.bf16.msra.mxu0 0
        %1189 = vmatprep.subr.bf16.mxu0 0
        %1190 = vmatpush1.bf16.msra.mxu0 0
        %1191 = vmatprep.subr.bf16.mxu0 0
        %1192 = vmatpush1.bf16.msra.mxu0 0
        %1193 = vmatprep.mubr.bf16.mxu0 0
        %1194 = vmatmul.mubr.bf16.gmra.mrb[0].mxu0 %v1159
        %v1195 = vpop.f32.mrb[0].mxu0
        %v1196 = vadd.f32 %v1144, %v1195
        %v1197 = vpop.f32.mrb[0].mxu0
        %v1198 = vpop.f32.mrb[0].mxu0
        %v1199 = vadd.f32 %v1144, %v1198
        %v1200 = vpop.f32.mrb[0].mxu0
        %1201 = vdwg.mxu0
        %v1202 = vadd.f32 %v505, %v1196
        %v1203 = vadd.f32 %v506, %v1199
        %v1204 = vld [vmem:[#allocation9] sm:$0x1]
        %v1205 = vld [vmem:[#allocation11] sm:$0x1]
        %v1206 = vsel %vm509, %v1202, 0.0
        %1207 = vadd.xlane.f32.xlu0 %v1206
        %v1208 = vpop.xlane.xlu0 %1207
        %v1209 = vsel %vm509, %v1203, 0.0
        %1210 = vadd.xlane.f32.xlu0 %v1209
        %v1211 = vpop.xlane.xlu0 %1210
        %v1212 = vmul.f32 %v1208, %v516
        %v1213 = vmul.f32 %v1211, %v516
        %v1214 = vsub.f32 %v1202, %v1212
        %v1215 = vsub.f32 %v1203, %v1213
        %v1216 = vmul.f32 %v1214, %v1214
        %v1217 = vmul.f32 %v1215, %v1215
        %v1218 = vsel %vm509, %v1216, 0.0
        %1219 = vadd.xlane.f32.xlu0 %v1218
        %v1220 = vpop.xlane.xlu0 %1219
        %v1221 = vsel %vm509, %v1217, 0.0
        %1222 = vadd.xlane.f32.xlu0 %v1221
        %v1223 = vpop.xlane.xlu0 %1222
        %v1224 = vmul.f32 %v1220, %v516
        %v1225 = vmul.f32 %v1223, %v516
        %v1226 = vadd.f32 %v1224, 1e-05
        %v1227 = vadd.f32 %v1225, 1e-05
        %v1228 = vrsqrt.pop %v1226
        %v1229 = vrsqrt.pop %v1227
        %v1230 = vmul.f32 %v1214, %v1228
        %v1231 = vmul.f32 %v1215, %v1229
        %v1233 = vlaneseq
        %v1234 = vshrl.u32 %v1233, 7
        %v1235 = vsub.s32 0, %v1234
        %v1236 = vrot.slane %v1204, %v1235
        %v1238 = vmul.f32 %v1230, %v1236
        %v1239 = vmul.f32 %v1231, %v1236
        %v1241 = vlaneseq
        %v1242 = vshrl.u32 %v1241, 7
        %v1243 = vsub.s32 0, %v1242
        %v1244 = vrot.slane %v1205, %v1243
        %v1246 = vadd.f32 %v1238, %v1244
        %v1247 = vadd.f32 %v1239, %v1244
        %v1248 = vpack.c.bf16 %v1247, %v1246
        %v1249 = vld [vmem:[%s9] sm:$0xf]
        %v1250 = vld [vmem:[%s9 + $0x4] sm:$0xf]
        %v1251 = vld [vmem:[%s9 + $0x8] sm:$0xf]
        %v1252 = vld [vmem:[%s9 + $0xc] sm:$0xf]
        %v1253 = vld [vmem:[%s10] sm:$0x1]
        %v1255 = vlaneseq
        %v1256 = vshrl.u32 %v1255, 7
        %v1257 = vsub.s32 0, %v1256
        %v1258 = vrot.slane %v1253, %v1257
        %v1264 = vunpack.c.l.b16 %v1249
        %v1265 = vunpack.c.l.b16 %v1250
        %v1266 = vunpack.c.l.b16 %v1251
        %v1267 = vunpack.c.l.b16 %v1252
        %v1268 = vpack.c.b16 %v1265, %v1264
        %v1269 = vpack.c.b16 %v1267, %v1266
        %v1273 = vsel %vm509, %v1248, 0
        %1275 = vmatprep.subr.bf16.mxu0 0
        %1276 = vmatpush1.bf16.msra.mxu0 %v1268
        %1277 = vmatprep.subr.bf16.mxu0 0
        %1278 = vmatpush1.bf16.msra.mxu0 %v1269
        %1279 = vmatprep.subr.bf16.mxu0 0
        %1280 = vmatpush1.bf16.msra.mxu0 0
        %1281 = vmatprep.subr.bf16.mxu0 0
        %1282 = vmatpush1.bf16.msra.mxu0 0
        %1283 = vmatprep.subr.bf16.mxu0 0
        %1284 = vmatpush1.bf16.msra.mxu0 0
        %1285 = vmatprep.subr.bf16.mxu0 0
        %1286 = vmatpush1.bf16.msra.mxu0 0
        %1287 = vmatprep.subr.bf16.mxu0 0
        %1288 = vmatpush1.bf16.msra.mxu0 0
        %1289 = vmatprep.subr.bf16.mxu0 0
        %1290 = vmatpush1.bf16.msra.mxu0 0
        %1291 = vmatprep.subr.bf16.mxu0 0
        %1292 = vmatpush1.bf16.msra.mxu0 0
        %1293 = vmatprep.subr.bf16.mxu0 0
        %1294 = vmatpush1.bf16.msra.mxu0 0
        %1295 = vmatprep.subr.bf16.mxu0 0
        %1296 = vmatpush1.bf16.msra.mxu0 0
        %1297 = vmatprep.subr.bf16.mxu0 0
        %1298 = vmatpush1.bf16.msra.mxu0 0
        %1299 = vmatprep.subr.bf16.mxu0 0
        %1300 = vmatpush1.bf16.msra.mxu0 0
        %1301 = vmatprep.subr.bf16.mxu0 0
        %1302 = vmatpush1.bf16.msra.mxu0 0
        %1303 = vmatprep.subr.bf16.mxu0 0
        %1304 = vmatpush1.bf16.msra.mxu0 0
        %1305 = vmatprep.subr.bf16.mxu0 0
        %1306 = vmatpush1.bf16.msra.mxu0 0
        %1307 = vmatprep.mubr.bf16.mxu0 0
        %1308 = vmatmul.mubr.bf16.gmra.mrb[0].mxu0 %v1273
        %v1309 = vpop.f32.mrb[0].mxu0
        %v1310 = vadd.f32 %v1258, %v1309
        %v1311 = vpop.f32.mrb[0].mxu0
        %v1312 = vpop.f32.mrb[0].mxu0
        %v1313 = vadd.f32 %v1258, %v1312
        %v1314 = vpop.f32.mrb[0].mxu0
        %1315 = vdwg.mxu0
        %v1316 = vmul.f32 %v1310, 0.5
        %v1317 = vmul.f32 %v1313, 0.5
        %v1318 = vmul.f32 %v1310, 0.70710677
        %v1319 = vmul.f32 %v1313, 0.70710677
        %v1320 = verf.f32.pop %v1318
        %v1321 = verf.f32.pop %v1319
        %v1322 = vadd.f32 %v1320, 1.0
        %v1323 = vadd.f32 %v1321, 1.0
        %v1324 = vmul.f32 %v1316, %v1322
        %v1325 = vmul.f32 %v1317, %v1323
        %v1326 = vpack.c.bf16 %v1325, %v1324
        %v1327 = vld [vmem:[%s11] sm:$0xf]
        %v1328 = vld [vmem:[%s11 + $0x4] sm:$0xf]
        %v1329 = vld [vmem:[%s11 + $0x8] sm:$0xf]
        %v1330 = vld [vmem:[%s11 + $0xc] sm:$0xf]
        %v1331 = vld [vmem:[%s11 + $0x10] sm:$0xf]
        %v1332 = vld [vmem:[%s11 + $0x14] sm:$0xf]
        %v1333 = vld [vmem:[%s11 + $0x18] sm:$0xf]
        %v1334 = vld [vmem:[%s11 + $0x1c] sm:$0xf]
        %v1335 = vld [vmem:[%s12] sm:$0x1]
        %v1337 = vlaneseq
        %v1338 = vshrl.u32 %v1337, 7
        %v1339 = vsub.s32 0, %v1338
        %v1340 = vrot.slane %v1335, %v1339
        %v1350 = vunpack.c.l.b16 %v1327
        %v1351 = vunpack.c.l.b16 %v1328
        %v1352 = vunpack.c.l.b16 %v1329
        %v1353 = vunpack.c.l.b16 %v1330
        %v1354 = vunpack.c.l.b16 %v1331
        %v1355 = vunpack.c.l.b16 %v1332
        %v1356 = vunpack.c.l.b16 %v1333
        %v1357 = vunpack.c.l.b16 %v1334
        %v1358 = vpack.c.b16 %v1351, %v1350
        %v1359 = vpack.c.b16 %v1353, %v1352
        %v1360 = vpack.c.b16 %v1355, %v1354
        %v1361 = vpack.c.b16 %v1357, %v1356
        %vm1366 = vcmask 523264
        %v1368 = vsel %vm1366, %v1326, 0
        %1370 = vmatprep.subr.bf16.mxu0 0
        %1371 = vmatpush1.bf16.msra.mxu0 %v1358
        %1372 = vmatprep.subr.bf16.mxu0 0
        %1373 = vmatpush1.bf16.msra.mxu0 %v1359
        %1374 = vmatprep.subr.bf16.mxu0 0
        %1375 = vmatpush1.bf16.msra.mxu0 %v1360
        %1376 = vmatprep.subr.bf16.mxu0 0
        %1377 = vmatpush1.bf16.msra.mxu0 %v1361
        %1378 = vmatprep.subr.bf16.mxu0 0
        %1379 = vmatpush1.bf16.msra.mxu0 0
        %1380 = vmatprep.subr.bf16.mxu0 0
        %1381 = vmatpush1.bf16.msra.mxu0 0
        %1382 = vmatprep.subr.bf16.mxu0 0
        %1383 = vmatpush1.bf16.msra.mxu0 0
        %1384 = vmatprep.subr.bf16.mxu0 0
        %1385 = vmatpush1.bf16.msra.mxu0 0
        %1386 = vmatprep.subr.bf16.mxu0 0
        %1387 = vmatpush1.bf16.msra.mxu0 0
        %1388 = vmatprep.subr.bf16.mxu0 0
        %1389 = vmatpush1.bf16.msra.mxu0 0
        %1390 = vmatprep.subr.bf16.mxu0 0
        %1391 = vmatpush1.bf16.msra.mxu0 0
        %1392 = vmatprep.subr.bf16.mxu0 0
        %1393 = vmatpush1.bf16.msra.mxu0 0
        %1394 = vmatprep.subr.bf16.mxu0 0
        %1395 = vmatpush1.bf16.msra.mxu0 0
        %1396 = vmatprep.subr.bf16.mxu0 0
        %1397 = vmatpush1.bf16.msra.mxu0 0
        %1398 = vmatprep.subr.bf16.mxu0 0
        %1399 = vmatpush1.bf16.msra.mxu0 0
        %1400 = vmatprep.subr.bf16.mxu0 0
        %1401 = vmatpush1.bf16.msra.mxu0 0
        %1402 = vmatprep.mubr.bf16.mxu0 0
        %1403 = vmatmul.mubr.bf16.gmra.mrb[0].mxu0 %v1368
        %v1404 = vpop.f32.mrb[0].mxu0
        %v1405 = vadd.f32 %v1340, %v1404
        %v1406 = vpop.f32.mrb[0].mxu0
        %v1407 = vpop.f32.mrb[0].mxu0
        %v1408 = vadd.f32 %v1340, %v1407
        %v1409 = vpop.f32.mrb[0].mxu0
        %1410 = vdwg.mxu0
        %v1411 = vadd.f32 %v1202, %v1405
        %v1412 = vadd.f32 %v1203, %v1408
        %1413 = vst.msk [vmem:[%s498] sm:$0xff] %vm509, %v1411
        %1414 = vst.msk [vmem:[%s498 + $0x8] sm:$0xff] %vm509, %v1412
        %s1415 = sand.u32 %s316, 1
        %s1416 = scalar_lea.sflag [#allocation5], %s1415
        %s1417 = sand.u32 %s316, 1
        %s1418 = smul.addr %s1417, 16
        %s1419 = scalar_lea.vmem [#allocation12], %s1418
        // Predicated region
        $region93: #{tpu_custom_call.1} parent=71 // pred_check
          %p1420 = pneg %p326
        $region94: #{tpu_custom_call.1} parent=71 // pred_check_branch
          %1422 = sbr.rel (%p1420) target = $region96
        $region95: #{tpu_custom_call.1} parent=71 // pred_region
          %s1424 = ssub.s32 256, 256
          %1425 = vsyncadd %s1416, %s1424
          %s1426 = smul.addr %s30, 2
          %s1427 = smul.addr %s1426, 128
          %s1428 = scalar_lea.hbm %s13, %s1427
          %s1429 = sshll.u32 %s1419, 4
          %s1430 = int_to_ptr.vmem [resolvable:$true] %s1429
          %1435 = dma.vmem_to_hbm [thread:$0]  %s1430, 256, %s1428, %s1416, 128, 128, 8
        $region96: #{tpu_custom_call.1} parent=71 // pred_fallthru
          _
      $region72: #{tpu_custom_call.1} parent=5 // pred_fallthru
        _
      %p1436 = scmp.le.s32.totalorder 2, %s25
      // Predicated region
      $region97: #{tpu_custom_call.1} parent=5 // pred_check
        %p1437 = pneg %p1436
      $region98: #{tpu_custom_call.1} parent=5 // pred_check_branch
        %1439 = sbr.rel (%p1437) target = $region100
      $region99: #{tpu_custom_call.1} parent=5 // pred_region
        %s1440 = ssub.s32 %s25, 2
        // Predicated region
        $region101: #{tpu_custom_call.1} parent=99 // pred_check
          %p1441 = pneg %p332
        $region102: #{tpu_custom_call.1} parent=99 // pred_check_branch
          %1443 = sbr.rel (%p1441) target = $region104
        $region103: #{tpu_custom_call.1} parent=99 // pred_region
          %s1444 = sand.u32 %s317, 1
          %s1445 = scalar_lea.sflag [#allocation5], %s1444
          %s1446 = sand.u32 %s317, 1
          %s1447 = smul.addr %s1446, 16
          %s1448 = scalar_lea.vmem [#allocation12], %s1447
          %1449 = dma.done %s1445, 256
        $region104: #{tpu_custom_call.1} parent=99 // pred_fallthru
          _
      $region100: #{tpu_custom_call.1} parent=5 // pred_fallthru
        _
    $region6: #{tpu_custom_call.1} parent=1 // loop_footer
      %s29 = sadd.s32 1, %s25
    $region7: #{tpu_custom_call.1} parent=1 // loop_footer_branch
      %24 = sbr.rel target = $region3
    $region8: #{tpu_custom_call.1} parent=1 // loop_exit
      _
    %1450 = vsyncpa [#allocation4], 1
    %s1451 = scalar_lea.sflag [#allocation4], 1
    %1452 = vsyncpa %s1451, 1
    %1453 = vsyncpa [#allocation7], 1
    %1454 = vsyncpa [#allocation10], 1
    %1455 = vsyncpa [#allocation5], 1
    %s1456 = scalar_lea.sflag [#allocation5], 1
    %1457 = vsyncpa %s1456, 1

</llo_original>
